<compile_context>
chip_gen: v5e
topology: v5e:2x2
jax: 0.10.0
libtpu: 0.0.40
codegen_flags: <defaults>
</compile_context>

<pallas_src>
import functools

import jax
import jax.numpy as jnp
import numpy as np
from jax.experimental import pallas as pl
from jax.experimental.pallas import tpu as pltpu


def _round_up(x, m):
    return ((x + m - 1) // m) * m


def _resblock_kernel(x_ref, w1_ref, b1_ref, w2_ref, b2_ref, o_ref, p_ref, *,
                     B, C, H, W, Wp, Hp, margin):
    """out = x + conv3x3(relu(conv3x3(x))), NCHW flat-spatial layout.

    x_ref : (B, C, H*Wp)   image rows padded to stride Wp (tail columns zero).
    w*_ref: (C, 9*C)       weights, columns ordered (ky, kx, cin).
    b*_ref: (C, 1)         bias.
    o_ref : (B, C, H*Wp)   output in the same flat layout (tail columns are
                           garbage and are sliced off by the wrapper).
    p_ref : (9*C, B*Hp*Wp) im2col patches scratch, reused by both convs.
    """
    HWp = H * Wp                  # valid-row span of one image, flattened
    Lb = Hp * Wp                  # per-image padded span (Hp >= H + 2)
    NL = B * Lb                   # total flat lanes seen by each matmul
    dt = x_ref.dtype

    zeros_margin = jnp.zeros((C, margin), dt)
    zeros_halo = jnp.zeros((C, Lb - HWp), dt)

    def flat_padded(per_image):
        # per_image[b]: (C, H*Wp) with zero tail columns.  Lay the B images
        # out along lanes with zero trailing halo rows and zero 128-lane
        # margins: every 3x3 tap of every valid pixel then reads either a
        # real pixel or a zero -> 'same' padding, no padded-image scratch.
        pieces = [zeros_margin]
        for b in range(B):
            pieces.append(per_image[b])
            pieces.append(zeros_halo)
        pieces.append(zeros_margin)
        return jnp.concatenate(pieces, axis=-1)       # (C, 2*margin + NL)

    def conv3x3(a_wide, w_ref, b_ref):
        # Build the (9C, NL) im2col slab: one wide dense lane-shifted copy
        # per tap, written straight into the persistent VMEM scratch.
        for ky in range(3):
            for kx in range(3):
                t = ky * 3 + kx
                s = (ky - 1) * Wp + (kx - 1)          # flat tap offset
                p_ref[t * C:(t + 1) * C, :] = (
                    a_wide[:, margin + s:margin + s + NL])
        # Single MXU dot per conv: (C, 9C) @ (9C, NL) -> lane-dense (C, NL).
        acc = jnp.dot(w_ref[...], p_ref[...],
                      preferred_element_type=jnp.float32)
        return acc + b_ref[...].astype(jnp.float32)   # bias broadcast on lanes

    # ---- conv1 + ReLU -------------------------------------------------
    a1 = flat_padded([x_ref[b] for b in range(B)])
    h1 = jnp.maximum(conv3x3(a1, w1_ref, b1_ref), 0.0)          # (C, NL) f32

    # Zero the non-image lanes (per-row tails, halo rows) so they act as the
    # zero padding of the second conv.  Pow2 bit-ops / compares only.
    lane = jax.lax.broadcasted_iota(jnp.int32, (1, NL), 1)
    col_ok = (lane & (Wp - 1)) < W
    row_ok = jnp.zeros_like(col_ok)
    for b in range(B):
        row_ok = row_ok | ((lane >= b * Lb) & (lane < b * Lb + HWp))
    h1 = jnp.where(col_ok & row_ok, h1, 0.0).astype(dt)

    # ---- conv2 ---------------------------------------------------------
    a2 = jnp.concatenate([zeros_margin, h1, zeros_margin], axis=-1)
    h2 = conv3x3(a2, w2_ref, b2_ref)                            # (C, NL) f32

    # ---- residual add (f32) + lane-dense per-image stores --------------
    for b in range(B):
        o_ref[b] = (x_ref[b].astype(jnp.float32)
                    + h2[:, b * Lb:b * Lb + HWp]).astype(o_ref.dtype)


def resblock_forward_nchw(x, w1, b1, w2, b2):
    """Matches _Resblock_.forward: x + conv2(relu(conv1(x))).  Input NCHW."""
    B, C, H, W = x.shape

    # Flat-spatial layout parameters.
    Wp = pl.next_power_of_2(W + 2)            # padded row stride (pow2 masks)
    Hp = _round_up(H + 2, max(1, 128 // Wp))  # rows/image so Hp*Wp % 128 == 0
    margin = _round_up(Wp + 1, 128)           # zero margin >= largest tap shift
    HWp, Lb = H * Wp, Hp * Wp
    NL = B * Lb

    # Lane-dense flat NCHW activations: zero-pad W -> Wp, flatten (H, Wp).
    x_flat = jnp.pad(x, ((0, 0), (0, 0), (0, 0), (0, Wp - W))).reshape(B, C, HWp)
    # (C_out, 9*C_in) weights with columns ordered (ky, kx, cin); (C, 1) bias.
    w1_m = jnp.transpose(w1, (0, 2, 3, 1)).reshape(C, 9 * C)
    w2_m = jnp.transpose(w2, (0, 2, 3, 1)).reshape(C, 9 * C)
    b1_m, b2_m = b1.reshape(C, 1), b2.reshape(C, 1)

    kernel = functools.partial(_resblock_kernel, B=B, C=C, H=H, W=W,
                               Wp=Wp, Hp=Hp, margin=margin)

    # Single invocation, no grid: everything (<1 MiB) lives in VMEM.
    out_flat = pl.pallas_call(
        kernel,
        out_shape=jax.ShapeDtypeStruct((B, C, HWp), x.dtype),
        scratch_shapes=[pltpu.VMEM((9 * C, NL), x.dtype)],
    )(x_flat, w1_m, b1_m, w2_m, b2_m)

    # Drop the zero tail columns (tiny XLA-side slice).
    return out_flat.reshape(B, C, H, Wp)[:, :, :, :W]


def _reference_nchw(x, w1, b1, w2, b2):
    def conv(v, w, b):
        y = jax.lax.conv_general_dilated(
            v, w, window_strides=(1, 1), padding=((1, 1), (1, 1)),
            dimension_numbers=("NCHW", "OIHW", "NCHW"))
        return y + b[None, :, None, None]
    h = jnp.maximum(conv(x, w1, b1), 0.0)
    return x + conv(h, w2, b2)


if __name__ == "__main__":
    B, C, H, W = 2, 4, 16, 16

    key = jax.random.PRNGKey(0)
    kx, kw1, kb1, kw2, kb2 = jax.random.split(key, 5)

    x = jax.random.normal(kx, (B, C, H, W), dtype=jnp.float32)
    # Conv2d(c, c, 3) parameter shapes: weight (C, C, 3, 3), bias (C,)
    w1 = 0.1 * jax.random.normal(kw1, (C, C, 3, 3), dtype=jnp.float32)
    b1 = 0.1 * jax.random.normal(kb1, (C,), dtype=jnp.float32)
    w2 = 0.1 * jax.random.normal(kw2, (C, C, 3, 3), dtype=jnp.float32)
    b2 = 0.1 * jax.random.normal(kb2, (C,), dtype=jnp.float32)

    out = jax.block_until_ready(resblock_forward_nchw(x, w1, b1, w2, b2))
    ref = jax.block_until_ready(_reference_nchw(x, w1, b1, w2, b2))

    np.testing.assert_allclose(np.asarray(out), np.asarray(ref),
                               rtol=1e-4, atol=1e-4)
    print("KERNEL_OK")
</pallas_src>

<mosaic_0001>
module attributes {stable_mosaic.version = 11 : i64} {
  func.func @_resblock_kernel(%arg0: memref<2x4x512xf32, #tpu.memory_space<vmem>>, %arg1: memref<4x36xf32, #tpu.memory_space<vmem>>, %arg2: memref<4x1xf32, #tpu.memory_space<vmem>>, %arg3: memref<4x36xf32, #tpu.memory_space<vmem>>, %arg4: memref<4x1xf32, #tpu.memory_space<vmem>>, %arg5: memref<2x4x512xf32, #tpu.memory_space<vmem>>, %arg6: memref<36x1280xf32, #tpu.memory_space<vmem>>) attributes {dimension_semantics = [], scalar_prefetch = 0 : i64, scratch_operands = 1 : i64, tpu.core_type = #tpu.core_type<tc>} {
    %cst = arith.constant 0.000000e+00 : f32
    %0 = vector.broadcast %cst : f32 to vector<4x128xf32>
    %cst_0 = arith.constant 0.000000e+00 : f32
    %1 = vector.broadcast %cst_0 : f32 to vector<4x128xf32>
    %c0 = arith.constant 0 : index
    %c0_1 = arith.constant 0 : index
    %c0_2 = arith.constant 0 : index
    %2 = vector.load %arg0[%c0, %c0_1, %c0_2] : memref<2x4x512xf32, #tpu.memory_space<vmem>>, vector<1x4x512xf32>
    %3 = vector.shape_cast %2 : vector<1x4x512xf32> to vector<4x512xf32>
    %c1 = arith.constant 1 : index
    %c0_3 = arith.constant 0 : index
    %c0_4 = arith.constant 0 : index
    %4 = vector.load %arg0[%c1, %c0_3, %c0_4] : memref<2x4x512xf32, #tpu.memory_space<vmem>>, vector<1x4x512xf32>
    %5 = vector.shape_cast %4 : vector<1x4x512xf32> to vector<4x512xf32>
    %6 = tpu.concatenate %0, %3, %1, %5, %1, %0 in 1 : vector<4x128xf32>, vector<4x512xf32>, vector<4x128xf32>, vector<4x512xf32>, vector<4x128xf32>, vector<4x128xf32> -> vector<4x1536xf32>
    %7 = vector.extract_strided_slice %6 {offsets = [0, 95], sizes = [4, 1280], strides = [1, 1]} : vector<4x1536xf32> to vector<4x1280xf32>
    %c0_5 = arith.constant 0 : index
    %c0_6 = arith.constant 0 : index
    %8 = vector.load %arg6[%c0_5, %c0_6] : memref<36x1280xf32, #tpu.memory_space<vmem>>, vector<4x1280xf32>
    tpu.vector_store %arg6[%c0_5, %c0_6], %7 {strides = array<i32>} : memref<36x1280xf32, #tpu.memory_space<vmem>>, vector<4x1280xf32>,
    %9 = vector.extract_strided_slice %6 {offsets = [0, 96], sizes = [4, 1280], strides = [1, 1]} : vector<4x1536xf32> to vector<4x1280xf32>
    %c4 = arith.constant 4 : index
    %c0_7 = arith.constant 0 : index
    %10 = vector.load %arg6[%c4, %c0_7] : memref<36x1280xf32, #tpu.memory_space<vmem>>, vector<4x1280xf32>
    tpu.vector_store %arg6[%c4, %c0_7], %9 {strides = array<i32>} : memref<36x1280xf32, #tpu.memory_space<vmem>>, vector<4x1280xf32>,
    %11 = vector.extract_strided_slice %6 {offsets = [0, 97], sizes = [4, 1280], strides = [1, 1]} : vector<4x1536xf32> to vector<4x1280xf32>
    %c8 = arith.constant 8 : index
    %c0_8 = arith.constant 0 : index
    %12 = vector.load %arg6[%c8, %c0_8] : memref<36x1280xf32, #tpu.memory_space<vmem>>, vector<4x1280xf32>
    tpu.vector_store %arg6[%c8, %c0_8], %11 {strides = array<i32>} : memref<36x1280xf32, #tpu.memory_space<vmem>>, vector<4x1280xf32>,
    %13 = vector.extract_strided_slice %6 {offsets = [0, 127], sizes = [4, 1280], strides = [1, 1]} : vector<4x1536xf32> to vector<4x1280xf32>
    %c12 = arith.constant 12 : index
    %c0_9 = arith.constant 0 : index
    %14 = vector.load %arg6[%c12, %c0_9] : memref<36x1280xf32, #tpu.memory_space<vmem>>, vector<4x1280xf32>
    tpu.vector_store %arg6[%c12, %c0_9], %13 {strides = array<i32>} : memref<36x1280xf32, #tpu.memory_space<vmem>>, vector<4x1280xf32>,
    %15 = vector.extract_strided_slice %6 {offsets = [0, 128], sizes = [4, 1280], strides = [1, 1]} : vector<4x1536xf32> to vector<4x1280xf32>
    %c16 = arith.constant 16 : index
    %c0_10 = arith.constant 0 : index
    %16 = vector.load %arg6[%c16, %c0_10] : memref<36x1280xf32, #tpu.memory_space<vmem>>, vector<4x1280xf32>
    tpu.vector_store %arg6[%c16, %c0_10], %15 {strides = array<i32>} : memref<36x1280xf32, #tpu.memory_space<vmem>>, vector<4x1280xf32>,
    %17 = vector.extract_strided_slice %6 {offsets = [0, 129], sizes = [4, 1280], strides = [1, 1]} : vector<4x1536xf32> to vector<4x1280xf32>
    %c20 = arith.constant 20 : index
    %c0_11 = arith.constant 0 : index
    %18 = vector.load %arg6[%c20, %c0_11] : memref<36x1280xf32, #tpu.memory_space<vmem>>, vector<4x1280xf32>
    tpu.vector_store %arg6[%c20, %c0_11], %17 {strides = array<i32>} : memref<36x1280xf32, #tpu.memory_space<vmem>>, vector<4x1280xf32>,
    %19 = vector.extract_strided_slice %6 {offsets = [0, 159], sizes = [4, 1280], strides = [1, 1]} : vector<4x1536xf32> to vector<4x1280xf32>
    %c24 = arith.constant 24 : index
    %c0_12 = arith.constant 0 : index
    %20 = vector.load %arg6[%c24, %c0_12] : memref<36x1280xf32, #tpu.memory_space<vmem>>, vector<4x1280xf32>
    tpu.vector_store %arg6[%c24, %c0_12], %19 {strides = array<i32>} : memref<36x1280xf32, #tpu.memory_space<vmem>>, vector<4x1280xf32>,
    %21 = vector.extract_strided_slice %6 {offsets = [0, 160], sizes = [4, 1280], strides = [1, 1]} : vector<4x1536xf32> to vector<4x1280xf32>
    %c28 = arith.constant 28 : index
    %c0_13 = arith.constant 0 : index
    %22 = vector.load %arg6[%c28, %c0_13] : memref<36x1280xf32, #tpu.memory_space<vmem>>, vector<4x1280xf32>
    tpu.vector_store %arg6[%c28, %c0_13], %21 {strides = array<i32>} : memref<36x1280xf32, #tpu.memory_space<vmem>>, vector<4x1280xf32>,
    %23 = vector.extract_strided_slice %6 {offsets = [0, 161], sizes = [4, 1280], strides = [1, 1]} : vector<4x1536xf32> to vector<4x1280xf32>
    %c32 = arith.constant 32 : index
    %c0_14 = arith.constant 0 : index
    %24 = vector.load %arg6[%c32, %c0_14] : memref<36x1280xf32, #tpu.memory_space<vmem>>, vector<4x1280xf32>
    tpu.vector_store %arg6[%c32, %c0_14], %23 {strides = array<i32>} : memref<36x1280xf32, #tpu.memory_space<vmem>>, vector<4x1280xf32>,
    %c0_15 = arith.constant 0 : index
    %c0_16 = arith.constant 0 : index
    %25 = vector.load %arg1[%c0_15, %c0_16] : memref<4x36xf32, #tpu.memory_space<vmem>>, vector<4x36xf32>
    %c0_17 = arith.constant 0 : index
    %c0_18 = arith.constant 0 : index
    %26 = vector.load %arg6[%c0_17, %c0_18] : memref<36x1280xf32, #tpu.memory_space<vmem>>, vector<36x1280xf32>
    %cst_19 = arith.constant dense<0.000000e+00> : vector<4x1280xf32>
    %27 = tpu.matmul %25, %26, %cst_19 {dimension_numbers = #tpu.dot_dimension_numbers<[1], [0], [0], [1], [0, 0, 1, 1], [], []>} : vector<4x36xf32>, vector<36x1280xf32>, vector<4x1280xf32> -> vector<4x1280xf32>
    %c0_20 = arith.constant 0 : index
    %c0_21 = arith.constant 0 : index
    %28 = vector.load %arg2[%c0_20, %c0_21] : memref<4x1xf32, #tpu.memory_space<vmem>>, vector<4x1xf32>
    %29 = vector.broadcast %28 : vector<4x1xf32> to vector<4x1280xf32>
    %30 = arith.addf %27, %29 : vector<4x1280xf32>
    %cst_22 = arith.constant 0.000000e+00 : f32
    %31 = vector.broadcast %cst_22 : f32 to vector<4x1280xf32>
    %32 = arith.maximumf %30, %31 : vector<4x1280xf32>
    %33 = tpu.iota {dimensions = array<i32: 1>} : vector<1x1280xi32>
    %c31_i32 = arith.constant 31 : i32
    %34 = vector.broadcast %c31_i32 : i32 to vector<1x1280xi32>
    %35 = arith.andi %33, %34 : vector<1x1280xi32>
    %c16_i32 = arith.constant 16 : i32
    %36 = vector.broadcast %c16_i32 : i32 to vector<1x1280xi32>
    %37 = arith.cmpi slt, %35, %36 : vector<1x1280xi32>
    %false = arith.constant false
    %38 = vector.broadcast %false : i1 to vector<1x1280xi1>
    %c0_i32 = arith.constant 0 : i32
    %39 = vector.broadcast %c0_i32 : i32 to vector<1x1280xi32>
    %40 = arith.cmpi sge, %33, %39 : vector<1x1280xi32>
    %c512_i32 = arith.constant 512 : i32
    %41 = vector.broadcast %c512_i32 : i32 to vector<1x1280xi32>
    %42 = arith.cmpi slt, %33, %41 : vector<1x1280xi32>
    %43 = arith.andi %40, %42 : vector<1x1280xi1>
    %44 = arith.ori %38, %43 : vector<1x1280xi1>
    %c640_i32 = arith.constant 640 : i32
    %45 = vector.broadcast %c640_i32 : i32 to vector<1x1280xi32>
    %46 = arith.cmpi sge, %33, %45 : vector<1x1280xi32>
    %c1152_i32 = arith.constant 1152 : i32
    %47 = vector.broadcast %c1152_i32 : i32 to vector<1x1280xi32>
    %48 = arith.cmpi slt, %33, %47 : vector<1x1280xi32>
    %49 = arith.andi %46, %48 : vector<1x1280xi1>
    %50 = arith.ori %44, %49 : vector<1x1280xi1>
    %51 = arith.andi %37, %50 : vector<1x1280xi1>
    %cst_23 = arith.constant 0.000000e+00 : f32
    %52 = vector.shape_cast %51 : vector<1x1280xi1> to vector<1x1280xi1>
    %53 = vector.broadcast %52 : vector<1x1280xi1> to vector<4x1280xi1>
    %54 = vector.broadcast %cst_23 : f32 to vector<4x1280xf32>
    %55 = arith.select %53, %32, %54 : vector<4x1280xi1>, vector<4x1280xf32>
    %56 = tpu.concatenate %0, %55, %0 in 1 : vector<4x128xf32>, vector<4x1280xf32>, vector<4x128xf32> -> vector<4x1536xf32>
    %57 = vector.extract_strided_slice %56 {offsets = [0, 95], sizes = [4, 1280], strides = [1, 1]} : vector<4x1536xf32> to vector<4x1280xf32>
    %c0_24 = arith.constant 0 : index
    %c0_25 = arith.constant 0 : index
    %58 = vector.load %arg6[%c0_24, %c0_25] : memref<36x1280xf32, #tpu.memory_space<vmem>>, vector<4x1280xf32>
    tpu.vector_store %arg6[%c0_24, %c0_25], %57 {strides = array<i32>} : memref<36x1280xf32, #tpu.memory_space<vmem>>, vector<4x1280xf32>,
    %59 = vector.extract_strided_slice %56 {offsets = [0, 96], sizes = [4, 1280], strides = [1, 1]} : vector<4x1536xf32> to vector<4x1280xf32>
    %c4_26 = arith.constant 4 : index
    %c0_27 = arith.constant 0 : index
    %60 = vector.load %arg6[%c4_26, %c0_27] : memref<36x1280xf32, #tpu.memory_space<vmem>>, vector<4x1280xf32>
    tpu.vector_store %arg6[%c4_26, %c0_27], %59 {strides = array<i32>} : memref<36x1280xf32, #tpu.memory_space<vmem>>, vector<4x1280xf32>,
    %61 = vector.extract_strided_slice %56 {offsets = [0, 97], sizes = [4, 1280], strides = [1, 1]} : vector<4x1536xf32> to vector<4x1280xf32>
    %c8_28 = arith.constant 8 : index
    %c0_29 = arith.constant 0 : index
    %62 = vector.load %arg6[%c8_28, %c0_29] : memref<36x1280xf32, #tpu.memory_space<vmem>>, vector<4x1280xf32>
    tpu.vector_store %arg6[%c8_28, %c0_29], %61 {strides = array<i32>} : memref<36x1280xf32, #tpu.memory_space<vmem>>, vector<4x1280xf32>,
    %63 = vector.extract_strided_slice %56 {offsets = [0, 127], sizes = [4, 1280], strides = [1, 1]} : vector<4x1536xf32> to vector<4x1280xf32>
    %c12_30 = arith.constant 12 : index
    %c0_31 = arith.constant 0 : index
    %64 = vector.load %arg6[%c12_30, %c0_31] : memref<36x1280xf32, #tpu.memory_space<vmem>>, vector<4x1280xf32>
    tpu.vector_store %arg6[%c12_30, %c0_31], %63 {strides = array<i32>} : memref<36x1280xf32, #tpu.memory_space<vmem>>, vector<4x1280xf32>,
    %65 = vector.extract_strided_slice %56 {offsets = [0, 128], sizes = [4, 1280], strides = [1, 1]} : vector<4x1536xf32> to vector<4x1280xf32>
    %c16_32 = arith.constant 16 : index
    %c0_33 = arith.constant 0 : index
    %66 = vector.load %arg6[%c16_32, %c0_33] : memref<36x1280xf32, #tpu.memory_space<vmem>>, vector<4x1280xf32>
    tpu.vector_store %arg6[%c16_32, %c0_33], %65 {strides = array<i32>} : memref<36x1280xf32, #tpu.memory_space<vmem>>, vector<4x1280xf32>,
    %67 = vector.extract_strided_slice %56 {offsets = [0, 129], sizes = [4, 1280], strides = [1, 1]} : vector<4x1536xf32> to vector<4x1280xf32>
    %c20_34 = arith.constant 20 : index
    %c0_35 = arith.constant 0 : index
    %68 = vector.load %arg6[%c20_34, %c0_35] : memref<36x1280xf32, #tpu.memory_space<vmem>>, vector<4x1280xf32>
    tpu.vector_store %arg6[%c20_34, %c0_35], %67 {strides = array<i32>} : memref<36x1280xf32, #tpu.memory_space<vmem>>, vector<4x1280xf32>,
    %69 = vector.extract_strided_slice %56 {offsets = [0, 159], sizes = [4, 1280], strides = [1, 1]} : vector<4x1536xf32> to vector<4x1280xf32>
    %c24_36 = arith.constant 24 : index
    %c0_37 = arith.constant 0 : index
    %70 = vector.load %arg6[%c24_36, %c0_37] : memref<36x1280xf32, #tpu.memory_space<vmem>>, vector<4x1280xf32>
    tpu.vector_store %arg6[%c24_36, %c0_37], %69 {strides = array<i32>} : memref<36x1280xf32, #tpu.memory_space<vmem>>, vector<4x1280xf32>,
    %71 = vector.extract_strided_slice %56 {offsets = [0, 160], sizes = [4, 1280], strides = [1, 1]} : vector<4x1536xf32> to vector<4x1280xf32>
    %c28_38 = arith.constant 28 : index
    %c0_39 = arith.constant 0 : index
    %72 = vector.load %arg6[%c28_38, %c0_39] : memref<36x1280xf32, #tpu.memory_space<vmem>>, vector<4x1280xf32>
    tpu.vector_store %arg6[%c28_38, %c0_39], %71 {strides = array<i32>} : memref<36x1280xf32, #tpu.memory_space<vmem>>, vector<4x1280xf32>,
    %73 = vector.extract_strided_slice %56 {offsets = [0, 161], sizes = [4, 1280], strides = [1, 1]} : vector<4x1536xf32> to vector<4x1280xf32>
    %c32_40 = arith.constant 32 : index
    %c0_41 = arith.constant 0 : index
    %74 = vector.load %arg6[%c32_40, %c0_41] : memref<36x1280xf32, #tpu.memory_space<vmem>>, vector<4x1280xf32>
    tpu.vector_store %arg6[%c32_40, %c0_41], %73 {strides = array<i32>} : memref<36x1280xf32, #tpu.memory_space<vmem>>, vector<4x1280xf32>,
    %c0_42 = arith.constant 0 : index
    %c0_43 = arith.constant 0 : index
    %75 = vector.load %arg3[%c0_42, %c0_43] : memref<4x36xf32, #tpu.memory_space<vmem>>, vector<4x36xf32>
    %c0_44 = arith.constant 0 : index
    %c0_45 = arith.constant 0 : index
    %76 = vector.load %arg6[%c0_44, %c0_45] : memref<36x1280xf32, #tpu.memory_space<vmem>>, vector<36x1280xf32>
    %cst_46 = arith.constant dense<0.000000e+00> : vector<4x1280xf32>
    %77 = tpu.matmul %75, %76, %cst_46 {dimension_numbers = #tpu.dot_dimension_numbers<[1], [0], [0], [1], [0, 0, 1, 1], [], []>} : vector<4x36xf32>, vector<36x1280xf32>, vector<4x1280xf32> -> vector<4x1280xf32>
    %c0_47 = arith.constant 0 : index
    %c0_48 = arith.constant 0 : index
    %78 = vector.load %arg4[%c0_47, %c0_48] : memref<4x1xf32, #tpu.memory_space<vmem>>, vector<4x1xf32>
    %79 = vector.broadcast %78 : vector<4x1xf32> to vector<4x1280xf32>
    %80 = arith.addf %77, %79 : vector<4x1280xf32>
    %c0_49 = arith.constant 0 : index
    %c0_50 = arith.constant 0 : index
    %c0_51 = arith.constant 0 : index
    %81 = vector.load %arg0[%c0_49, %c0_50, %c0_51] : memref<2x4x512xf32, #tpu.memory_space<vmem>>, vector<1x4x512xf32>
    %82 = vector.shape_cast %81 : vector<1x4x512xf32> to vector<4x512xf32>
    %83 = vector.extract_strided_slice %80 {offsets = [0, 0], sizes = [4, 512], strides = [1, 1]} : vector<4x1280xf32> to vector<4x512xf32>
    %84 = arith.addf %82, %83 : vector<4x512xf32>
    %c0_52 = arith.constant 0 : index
    %c0_53 = arith.constant 0 : index
    %c0_54 = arith.constant 0 : index
    %85 = vector.load %arg5[%c0_52, %c0_53, %c0_54] : memref<2x4x512xf32, #tpu.memory_space<vmem>>, vector<1x4x512xf32>
    %86 = vector.shape_cast %85 : vector<1x4x512xf32> to vector<4x512xf32>
    %87 = vector.shape_cast %84 : vector<4x512xf32> to vector<1x4x512xf32>
    tpu.vector_store %arg5[%c0_52, %c0_53, %c0_54], %87 {strides = array<i32>} : memref<2x4x512xf32, #tpu.memory_space<vmem>>, vector<1x4x512xf32>,
    %c1_55 = arith.constant 1 : index
    %c0_56 = arith.constant 0 : index
    %c0_57 = arith.constant 0 : index
    %88 = vector.load %arg0[%c1_55, %c0_56, %c0_57] : memref<2x4x512xf32, #tpu.memory_space<vmem>>, vector<1x4x512xf32>
    %89 = vector.shape_cast %88 : vector<1x4x512xf32> to vector<4x512xf32>
    %90 = vector.extract_strided_slice %80 {offsets = [0, 640], sizes = [4, 512], strides = [1, 1]} : vector<4x1280xf32> to vector<4x512xf32>
    %91 = arith.addf %89, %90 : vector<4x512xf32>
    %c1_58 = arith.constant 1 : index
    %c0_59 = arith.constant 0 : index
    %c0_60 = arith.constant 0 : index
    %92 = vector.load %arg5[%c1_58, %c0_59, %c0_60] : memref<2x4x512xf32, #tpu.memory_space<vmem>>, vector<1x4x512xf32>
    %93 = vector.shape_cast %92 : vector<1x4x512xf32> to vector<4x512xf32>
    %94 = vector.shape_cast %91 : vector<4x512xf32> to vector<1x4x512xf32>
    tpu.vector_store %arg5[%c1_58, %c0_59, %c0_60], %94 {strides = array<i32>} : memref<2x4x512xf32, #tpu.memory_space<vmem>>, vector<1x4x512xf32>,
    return
  }
}

</mosaic_0001>

<llo_original>
// kernel: tpu_custom_call.1
$region0: #{tpu_custom_call.1}
  #allocation0 [shape = 'u32[]', space=smem, size = 0x4, offset = 0x4, fixed_abs, tag = 'smem constant byte address 0x4 - core index']
  #allocation1 [shape = 'u32[72,128]{1,0:T(1,128)}', space=vmem, size = 0x9000, scoped, tag = 'internal scratch']
  #allocation2 [shape = 'f32[36,1280]{1,0:T(8,128)}', space=vmem, size = 0x32000, scoped, tag = 'scratch operand']
  %s0 = inlined_call_operand.hbm [shape: f32[2,4,512], index: 0, kind: input, shape index: {}]
  %s1 = inlined_call_operand.vmem [shape: f32[4,36], index: 1, kind: input, shape index: {}]
  %s2 = inlined_call_operand.vmem [shape: f32[4,1], index: 2, kind: input, shape index: {}]
  %s3 = inlined_call_operand.vmem [shape: f32[4,36], index: 3, kind: input, shape index: {}]
  %s4 = inlined_call_operand.vmem [shape: f32[4,1], index: 4, kind: input, shape index: {}]
  %s5 = inlined_call_operand.hbm [shape: f32[2,4,512], index: 5, kind: output, shape index: {}]
  %s6 = sld [smem:[#allocation0]]
  $region34: #{tpu_custom_call.1} parent=0
    _
  %s8 = ssub.s32 1, %s6
  %s9 = scalar_select 0, %s8, %s6
  $region1: #{tpu_custom_call.1} parent=0
    #allocation3 [shape = 'u8[16384]{0}', space=vmem, size = 0x4000, scoped, tag = 'input window, operand 0, single buffered']
    #allocation4 [shape = 's32[1]{0}', space=sflag, size = 0x4, scoped, tag = 'scoped memory for tpu_custom_call.1']
    #allocation5 [shape = 's32[1]{0}', space=sflag, size = 0x4, scoped, tag = 'scoped memory for tpu_custom_call.1']
    #allocation6 [shape = 'u8[16384]{0}', space=vmem, size = 0x4000, scoped, tag = 'output window, operand 0, single buffered']
    %10 = vsyncpa [#allocation4], 0
    %11 = vsyncpa [#allocation5], 0
    // Predicated region
    $region2: #{tpu_custom_call.1} parent=1 // pred_check
      _
    $region3: #{tpu_custom_call.1} parent=1 // pred_check_branch
      %13 = sbr.rel (0) target = $region5
    $region4: #{tpu_custom_call.1} parent=1 // pred_region
      %15 = vsyncadd [#allocation4], 0
      %s16 = sshll.u32 %s0, 4
      %s17 = int_to_ptr.hbm [resolvable:$true] %s16
      %s18 = sshll.u32 [#allocation3], 4
      %s19 = int_to_ptr.vmem [resolvable:$true] %s18
      %24 = dma.hbm_to_vmem [thread:$0]  %s17, 512, %s19, [#allocation4], 256, 256, 16
    $region5: #{tpu_custom_call.1} parent=1 // pred_fallthru
      _
    // Predicated region
    $region6: #{tpu_custom_call.1} parent=1 // pred_check
      _
    $region7: #{tpu_custom_call.1} parent=1 // pred_check_branch
      %26 = sbr.rel (0) target = $region9
    $region8: #{tpu_custom_call.1} parent=1 // pred_region
      _
    $region9: #{tpu_custom_call.1} parent=1 // pred_fallthru
      _
    // Predicated region
    $region10: #{tpu_custom_call.1} parent=1 // pred_check
      _
    $region11: #{tpu_custom_call.1} parent=1 // pred_check_branch
      %28 = sbr.rel (0) target = $region13
    $region12: #{tpu_custom_call.1} parent=1 // pred_region
      _
    $region13: #{tpu_custom_call.1} parent=1 // pred_fallthru
      _
    // Predicated region
    $region14: #{tpu_custom_call.1} parent=1 // pred_check
      _
    $region15: #{tpu_custom_call.1} parent=1 // pred_check_branch
      %30 = sbr.rel (0) target = $region17
    $region16: #{tpu_custom_call.1} parent=1 // pred_region
      _
    $region17: #{tpu_custom_call.1} parent=1 // pred_fallthru
      _
    // Predicated region
    $region18: #{tpu_custom_call.1} parent=1 // pred_check
      _
    $region19: #{tpu_custom_call.1} parent=1 // pred_check_branch
      %32 = sbr.rel (0) target = $region21
    $region20: #{tpu_custom_call.1} parent=1 // pred_region
      _
    $region21: #{tpu_custom_call.1} parent=1 // pred_fallthru
      _
    // Predicated region
    $region22: #{tpu_custom_call.1} parent=1 // pred_check
      _
    $region23: #{tpu_custom_call.1} parent=1 // pred_check_branch
      %34 = sbr.rel (0) target = $region25
    $region24: #{tpu_custom_call.1} parent=1 // pred_region
      %36 = dma.done [#allocation4], 512
    $region25: #{tpu_custom_call.1} parent=1 // pred_fallthru
      _
    %v37 = vld [vmem:[#allocation3] sm:$0xff]
    %v38 = vld [vmem:[#allocation3 + $0x8] sm:$0xff]
    %s39 = scalar_lea.vmem [#allocation3], 16
    %v40 = vld [vmem:[%s39] sm:$0xff]
    %v41 = vld [vmem:[%s39 + $0x8] sm:$0xff]
    %44 = vst [vmem:[#allocation1] ss:$2 sm:$0xff] %v37
    %s45 = scalar_lea.vmem [#allocation1], 16
    %46 = vst [vmem:[%s45] ss:$2 sm:$0xff] %v38
    %v47 = vld.sshfl [vmem:[#allocation1] sm:$0xff pattern:$0x75316420]
    %v48 = vld.sshfl [vmem:[#allocation1 + $0x8] sm:$0xff pattern:$0x75316420]
    %v49 = vld.sshfl [vmem:[#allocation1 + $0x10] sm:$0xff pattern:$0x75316420]
    %v50 = vld.sshfl [vmem:[#allocation1 + $0x18] sm:$0xff pattern:$0x75316420]
    %57 = vst [vmem:[#allocation1] ss:$2 sm:$0xff] %v40
    %s58 = scalar_lea.vmem [#allocation1], 16
    %59 = vst [vmem:[%s58] ss:$2 sm:$0xff] %v41
    %v60 = vld.sshfl [vmem:[#allocation1] sm:$0xff pattern:$0x75316420]
    %v61 = vld.sshfl [vmem:[#allocation1 + $0x8] sm:$0xff pattern:$0x75316420]
    %v62 = vld.sshfl [vmem:[#allocation1 + $0x10] sm:$0xff pattern:$0x75316420]
    %v63 = vld.sshfl [vmem:[#allocation1 + $0x18] sm:$0xff pattern:$0x75316420]
    %69 = vrot.lane.b32.xlu0 0.0, 33
    %v70 = vpop.permute.xlu0 %69
    %71 = vrot.lane.b32.xlu0 %v47, 33
    %v72 = vpop.permute.xlu0 %71
    %73 = vrot.lane.b32.xlu0 %v48, 33
    %v74 = vpop.permute.xlu0 %73
    %75 = vrot.lane.b32.xlu0 %v49, 33
    %v76 = vpop.permute.xlu0 %75
    %77 = vrot.lane.b32.xlu0 %v50, 33
    %v78 = vpop.permute.xlu0 %77
    %79 = vrot.lane.b32.xlu0 %v60, 33
    %v80 = vpop.permute.xlu0 %79
    %81 = vrot.lane.b32.xlu0 %v61, 33
    %v82 = vpop.permute.xlu0 %81
    %83 = vrot.lane.b32.xlu0 %v62, 33
    %v84 = vpop.permute.xlu0 %83
    %85 = vrot.lane.b32.xlu0 %v63, 33
    %v86 = vpop.permute.xlu0 %85
    %vm87 = vcmask 269312
    %v88 = vsel %vm87, %v70, %v72
    %v89 = vsel %vm87, %v72, %v74
    %v90 = vsel %vm87, %v74, %v76
    %v91 = vsel %vm87, %v76, %v78
    %v92 = vsel %vm87, %v78, %v70
    %v93 = vsel %vm87, %v70, %v80
    %v94 = vsel %vm87, %v80, %v82
    %v95 = vsel %vm87, %v82, %v84
    %v96 = vsel %vm87, %v84, %v86
    %v97 = vsel %vm87, %v86, %v70
    %108 = vst [vmem:[#allocation2] sm:$0xf] %v88
    %109 = vst [vmem:[#allocation2 + $0x8] sm:$0xf] %v89
    %110 = vst [vmem:[#allocation2 + $0x10] sm:$0xf] %v90
    %111 = vst [vmem:[#allocation2 + $0x18] sm:$0xf] %v91
    %112 = vst [vmem:[#allocation2 + $0x20] sm:$0xf] %v92
    %113 = vst [vmem:[#allocation2 + $0x28] sm:$0xf] %v93
    %114 = vst [vmem:[#allocation2 + $0x30] sm:$0xf] %v94
    %115 = vst [vmem:[#allocation2 + $0x38] sm:$0xf] %v95
    %116 = vst [vmem:[#allocation2 + $0x40] sm:$0xf] %v96
    %117 = vst [vmem:[#allocation2 + $0x48] sm:$0xf] %v97
    %v118 = vrot.slane 0.0, 4
    %v119 = vrot.slane %v47, 4
    %v120 = vrot.slane %v48, 4
    %v121 = vrot.slane %v49, 4
    %v122 = vrot.slane %v50, 4
    %v123 = vrot.slane %v60, 4
    %v124 = vrot.slane %v61, 4
    %v125 = vrot.slane %v62, 4
    %v126 = vrot.slane %v63, 4
    %127 = vrot.lane.b32.xlu0 %v118, 32
    %v128 = vpop.permute.xlu0 %127
    %129 = vrot.lane.b32.xlu0 %v119, 32
    %v130 = vpop.permute.xlu0 %129
    %131 = vrot.lane.b32.xlu0 %v120, 32
    %v132 = vpop.permute.xlu0 %131
    %133 = vrot.lane.b32.xlu0 %v121, 32
    %v134 = vpop.permute.xlu0 %133
    %135 = vrot.lane.b32.xlu0 %v122, 32
    %v136 = vpop.permute.xlu0 %135
    %137 = vrot.lane.b32.xlu0 %v123, 32
    %v138 = vpop.permute.xlu0 %137
    %139 = vrot.lane.b32.xlu0 %v124, 32
    %v140 = vpop.permute.xlu0 %139
    %141 = vrot.lane.b32.xlu0 %v125, 32
    %v142 = vpop.permute.xlu0 %141
    %143 = vrot.lane.b32.xlu0 %v126, 32
    %v144 = vpop.permute.xlu0 %143
    %vm145 = vcmask 261120
    %v146 = vsel %vm145, %v128, %v130
    %v147 = vsel %vm145, %v130, %v132
    %v148 = vsel %vm145, %v132, %v134
    %v149 = vsel %vm145, %v134, %v136
    %v150 = vsel %vm145, %v136, %v128
    %v151 = vsel %vm145, %v128, %v138
    %v152 = vsel %vm145, %v138, %v140
    %v153 = vsel %vm145, %v140, %v142
    %v154 = vsel %vm145, %v142, %v144
    %v155 = vsel %vm145, %v144, %v128
    %166 = vst [vmem:[#allocation2] sm:$0xf0] %v146
    %167 = vst [vmem:[#allocation2 + $0x8] sm:$0xf0] %v147
    %168 = vst [vmem:[#allocation2 + $0x10] sm:$0xf0] %v148
    %169 = vst [vmem:[#allocation2 + $0x18] sm:$0xf0] %v149
    %170 = vst [vmem:[#allocation2 + $0x20] sm:$0xf0] %v150
    %171 = vst [vmem:[#allocation2 + $0x28] sm:$0xf0] %v151
    %172 = vst [vmem:[#allocation2 + $0x30] sm:$0xf0] %v152
    %173 = vst [vmem:[#allocation2 + $0x38] sm:$0xf0] %v153
    %174 = vst [vmem:[#allocation2 + $0x40] sm:$0xf0] %v154
    %175 = vst [vmem:[#allocation2 + $0x48] sm:$0xf0] %v155
    %176 = vrot.lane.b32.xlu0 0.0, 31
    %v177 = vpop.permute.xlu0 %176
    %178 = vrot.lane.b32.xlu0 %v47, 31
    %v179 = vpop.permute.xlu0 %178
    %180 = vrot.lane.b32.xlu0 %v48, 31
    %v181 = vpop.permute.xlu0 %180
    %182 = vrot.lane.b32.xlu0 %v49, 31
    %v183 = vpop.permute.xlu0 %182
    %184 = vrot.lane.b32.xlu0 %v50, 31
    %v185 = vpop.permute.xlu0 %184
    %186 = vrot.lane.b32.xlu0 %v60, 31
    %v187 = vpop.permute.xlu0 %186
    %188 = vrot.lane.b32.xlu0 %v61, 31
    %v189 = vpop.permute.xlu0 %188
    %190 = vrot.lane.b32.xlu0 %v62, 31
    %v191 = vpop.permute.xlu0 %190
    %192 = vrot.lane.b32.xlu0 %v63, 31
    %v193 = vpop.permute.xlu0 %192
    %vm194 = vcmask 252928
    %v195 = vsel %vm194, %v177, %v179
    %v196 = vsel %vm194, %v179, %v181
    %v197 = vsel %vm194, %v181, %v183
    %v198 = vsel %vm194, %v183, %v185
    %v199 = vsel %vm194, %v185, %v177
    %v200 = vsel %vm194, %v177, %v187
    %v201 = vsel %vm194, %v187, %v189
    %v202 = vsel %vm194, %v189, %v191
    %v203 = vsel %vm194, %v191, %v193
    %v204 = vsel %vm194, %v193, %v177
    %215 = vst [vmem:[#allocation2 + $0x50] sm:$0xf] %v195
    %216 = vst [vmem:[#allocation2 + $0x58] sm:$0xf] %v196
    %217 = vst [vmem:[#allocation2 + $0x60] sm:$0xf] %v197
    %218 = vst [vmem:[#allocation2 + $0x68] sm:$0xf] %v198
    %219 = vst [vmem:[#allocation2 + $0x70] sm:$0xf] %v199
    %220 = vst [vmem:[#allocation2 + $0x78] sm:$0xf] %v200
    %221 = vst [vmem:[#allocation2 + $0x80] sm:$0xf] %v201
    %222 = vst [vmem:[#allocation2 + $0x88] sm:$0xf] %v202
    %223 = vst [vmem:[#allocation2 + $0x90] sm:$0xf] %v203
    %224 = vst [vmem:[#allocation2 + $0x98] sm:$0xf] %v204
    %225 = vrot.lane.b32.xlu0 %v118, 1
    %v226 = vpop.permute.xlu0 %225
    %227 = vrot.lane.b32.xlu0 %v119, 1
    %v228 = vpop.permute.xlu0 %227
    %229 = vrot.lane.b32.xlu0 %v120, 1
    %v230 = vpop.permute.xlu0 %229
    %231 = vrot.lane.b32.xlu0 %v121, 1
    %v232 = vpop.permute.xlu0 %231
    %233 = vrot.lane.b32.xlu0 %v122, 1
    %v234 = vpop.permute.xlu0 %233
    %235 = vrot.lane.b32.xlu0 %v123, 1
    %v236 = vpop.permute.xlu0 %235
    %237 = vrot.lane.b32.xlu0 %v124, 1
    %v238 = vpop.permute.xlu0 %237
    %239 = vrot.lane.b32.xlu0 %v125, 1
    %v240 = vpop.permute.xlu0 %239
    %241 = vrot.lane.b32.xlu0 %v126, 1
    %v242 = vpop.permute.xlu0 %241
    %vm243 = vcmask 7168
    %v244 = vsel %vm243, %v226, %v228
    %v245 = vsel %vm243, %v228, %v230
    %v246 = vsel %vm243, %v230, %v232
    %v247 = vsel %vm243, %v232, %v234
    %v248 = vsel %vm243, %v234, %v226
    %v249 = vsel %vm243, %v226, %v236
    %v250 = vsel %vm243, %v236, %v238
    %v251 = vsel %vm243, %v238, %v240
    %v252 = vsel %vm243, %v240, %v242
    %v253 = vsel %vm243, %v242, %v226
    %264 = vst [vmem:[#allocation2 + $0x50] sm:$0xf0] %v244
    %265 = vst [vmem:[#allocation2 + $0x58] sm:$0xf0] %v245
    %266 = vst [vmem:[#allocation2 + $0x60] sm:$0xf0] %v246
    %267 = vst [vmem:[#allocation2 + $0x68] sm:$0xf0] %v247
    %268 = vst [vmem:[#allocation2 + $0x70] sm:$0xf0] %v248
    %269 = vst [vmem:[#allocation2 + $0x78] sm:$0xf0] %v249
    %270 = vst [vmem:[#allocation2 + $0x80] sm:$0xf0] %v250
    %271 = vst [vmem:[#allocation2 + $0x88] sm:$0xf0] %v251
    %272 = vst [vmem:[#allocation2 + $0x90] sm:$0xf0] %v252
    %273 = vst [vmem:[#allocation2 + $0x98] sm:$0xf0] %v253
    %274 = vst [vmem:[#allocation2 + $0xa0] sm:$0xf] %v47
    %275 = vst [vmem:[#allocation2 + $0xa8] sm:$0xf] %v48
    %276 = vst [vmem:[#allocation2 + $0xb0] sm:$0xf] %v49
    %277 = vst [vmem:[#allocation2 + $0xb8] sm:$0xf] %v50
    %278 = vst [vmem:[#allocation2 + $0xc0] sm:$0xf] 0.0
    %279 = vst [vmem:[#allocation2 + $0xc8] sm:$0xf] %v60
    %280 = vst [vmem:[#allocation2 + $0xd0] sm:$0xf] %v61
    %281 = vst [vmem:[#allocation2 + $0xd8] sm:$0xf] %v62
    %282 = vst [vmem:[#allocation2 + $0xe0] sm:$0xf] %v63
    %283 = vst [vmem:[#allocation2 + $0xe8] sm:$0xf] 0.0
    %284 = vrot.lane.b32.xlu0 %v119, 127
    %v285 = vpop.permute.xlu0 %284
    %286 = vrot.lane.b32.xlu0 %v120, 127
    %v287 = vpop.permute.xlu0 %286
    %288 = vrot.lane.b32.xlu0 %v121, 127
    %v289 = vpop.permute.xlu0 %288
    %290 = vrot.lane.b32.xlu0 %v122, 127
    %v291 = vpop.permute.xlu0 %290
    %292 = vrot.lane.b32.xlu0 %v118, 127
    %v293 = vpop.permute.xlu0 %292
    %294 = vrot.lane.b32.xlu0 %v123, 127
    %v295 = vpop.permute.xlu0 %294
    %296 = vrot.lane.b32.xlu0 %v124, 127
    %v297 = vpop.permute.xlu0 %296
    %298 = vrot.lane.b32.xlu0 %v125, 127
    %v299 = vpop.permute.xlu0 %298
    %300 = vrot.lane.b32.xlu0 %v126, 127
    %v301 = vpop.permute.xlu0 %300
    %vm302 = vcmask 1039360
    %v303 = vsel %vm302, %v285, %v287
    %v304 = vsel %vm302, %v287, %v289
    %v305 = vsel %vm302, %v289, %v291
    %v306 = vsel %vm302, %v291, %v293
    %v307 = vsel %vm302, %v293, %v295
    %v308 = vsel %vm302, %v295, %v297
    %v309 = vsel %vm302, %v297, %v299
    %v310 = vsel %vm302, %v299, %v301
    %v311 = vsel %vm302, %v301, %v293
    %322 = vst [vmem:[#allocation2 + $0xa0] sm:$0xf0] %v303
    %323 = vst [vmem:[#allocation2 + $0xa8] sm:$0xf0] %v304
    %324 = vst [vmem:[#allocation2 + $0xb0] sm:$0xf0] %v305
    %325 = vst [vmem:[#allocation2 + $0xb8] sm:$0xf0] %v306
    %326 = vst [vmem:[#allocation2 + $0xc0] sm:$0xf0] %v307
    %327 = vst [vmem:[#allocation2 + $0xc8] sm:$0xf0] %v308
    %328 = vst [vmem:[#allocation2 + $0xd0] sm:$0xf0] %v309
    %329 = vst [vmem:[#allocation2 + $0xd8] sm:$0xf0] %v310
    %330 = vst [vmem:[#allocation2 + $0xe0] sm:$0xf0] %v311
    %331 = vst [vmem:[#allocation2 + $0xe8] sm:$0xf0] %v293
    %332 = vrot.lane.b32.xlu0 %v47, 97
    %v333 = vpop.permute.xlu0 %332
    %334 = vrot.lane.b32.xlu0 %v48, 97
    %v335 = vpop.permute.xlu0 %334
    %336 = vrot.lane.b32.xlu0 %v49, 97
    %v337 = vpop.permute.xlu0 %336
    %338 = vrot.lane.b32.xlu0 %v50, 97
    %v339 = vpop.permute.xlu0 %338
    %340 = vrot.lane.b32.xlu0 0.0, 97
    %v341 = vpop.permute.xlu0 %340
    %342 = vrot.lane.b32.xlu0 %v60, 97
    %v343 = vpop.permute.xlu0 %342
    %344 = vrot.lane.b32.xlu0 %v61, 97
    %v345 = vpop.permute.xlu0 %344
    %346 = vrot.lane.b32.xlu0 %v62, 97
    %v347 = vpop.permute.xlu0 %346
    %348 = vrot.lane.b32.xlu0 %v63, 97
    %v349 = vpop.permute.xlu0 %348
    %vm350 = vcmask 793600
    %v351 = vsel %vm350, %v333, %v335
    %v352 = vsel %vm350, %v335, %v337
    %v353 = vsel %vm350, %v337, %v339
    %v354 = vsel %vm350, %v339, %v341
    %v355 = vsel %vm350, %v341, %v343
    %v356 = vsel %vm350, %v343, %v345
    %v357 = vsel %vm350, %v345, %v347
    %v358 = vsel %vm350, %v347, %v349
    %v359 = vsel %vm350, %v349, %v341
    %370 = vst [vmem:[#allocation2 + $0xf0] sm:$0xf] %v351
    %371 = vst [vmem:[#allocation2 + $0xf8] sm:$0xf] %v352
    %372 = vst [vmem:[#allocation2 + $0x100] sm:$0xf] %v353
    %373 = vst [vmem:[#allocation2 + $0x108] sm:$0xf] %v354
    %374 = vst [vmem:[#allocation2 + $0x110] sm:$0xf] %v355
    %375 = vst [vmem:[#allocation2 + $0x118] sm:$0xf] %v356
    %376 = vst [vmem:[#allocation2 + $0x120] sm:$0xf] %v357
    %377 = vst [vmem:[#allocation2 + $0x128] sm:$0xf] %v358
    %378 = vst [vmem:[#allocation2 + $0x130] sm:$0xf] %v359
    %379 = vst [vmem:[#allocation2 + $0x138] sm:$0xf] %v341
    %380 = vrot.lane.b32.xlu0 %v119, 96
    %v381 = vpop.permute.xlu0 %380
    %382 = vrot.lane.b32.xlu0 %v120, 96
    %v383 = vpop.permute.xlu0 %382
    %384 = vrot.lane.b32.xlu0 %v121, 96
    %v385 = vpop.permute.xlu0 %384
    %386 = vrot.lane.b32.xlu0 %v122, 96
    %v387 = vpop.permute.xlu0 %386
    %388 = vrot.lane.b32.xlu0 %v118, 96
    %v389 = vpop.permute.xlu0 %388
    %390 = vrot.lane.b32.xlu0 %v123, 96
    %v391 = vpop.permute.xlu0 %390
    %392 = vrot.lane.b32.xlu0 %v124, 96
    %v393 = vpop.permute.xlu0 %392
    %394 = vrot.lane.b32.xlu0 %v125, 96
    %v395 = vpop.permute.xlu0 %394
    %396 = vrot.lane.b32.xlu0 %v126, 96
    %v397 = vpop.permute.xlu0 %396
    %vm398 = vcmask 785408
    %v399 = vsel %vm398, %v381, %v383
    %v400 = vsel %vm398, %v383, %v385
    %v401 = vsel %vm398, %v385, %v387
    %v402 = vsel %vm398, %v387, %v389
    %v403 = vsel %vm398, %v389, %v391
    %v404 = vsel %vm398, %v391, %v393
    %v405 = vsel %vm398, %v393, %v395
    %v406 = vsel %vm398, %v395, %v397
    %v407 = vsel %vm398, %v397, %v389
    %418 = vst [vmem:[#allocation2 + $0xf0] sm:$0xf0] %v399
    %419 = vst [vmem:[#allocation2 + $0xf8] sm:$0xf0] %v400
    %420 = vst [vmem:[#allocation2 + $0x100] sm:$0xf0] %v401
    %421 = vst [vmem:[#allocation2 + $0x108] sm:$0xf0] %v402
    %422 = vst [vmem:[#allocation2 + $0x110] sm:$0xf0] %v403
    %423 = vst [vmem:[#allocation2 + $0x118] sm:$0xf0] %v404
    %424 = vst [vmem:[#allocation2 + $0x120] sm:$0xf0] %v405
    %425 = vst [vmem:[#allocation2 + $0x128] sm:$0xf0] %v406
    %426 = vst [vmem:[#allocation2 + $0x130] sm:$0xf0] %v407
    %427 = vst [vmem:[#allocation2 + $0x138] sm:$0xf0] %v389
    %428 = vrot.lane.b32.xlu0 %v47, 95
    %v429 = vpop.permute.xlu0 %428
    %430 = vrot.lane.b32.xlu0 %v48, 95
    %v431 = vpop.permute.xlu0 %430
    %432 = vrot.lane.b32.xlu0 %v49, 95
    %v433 = vpop.permute.xlu0 %432
    %434 = vrot.lane.b32.xlu0 %v50, 95
    %v435 = vpop.permute.xlu0 %434
    %436 = vrot.lane.b32.xlu0 0.0, 95
    %v437 = vpop.permute.xlu0 %436
    %438 = vrot.lane.b32.xlu0 %v60, 95
    %v439 = vpop.permute.xlu0 %438
    %440 = vrot.lane.b32.xlu0 %v61, 95
    %v441 = vpop.permute.xlu0 %440
    %442 = vrot.lane.b32.xlu0 %v62, 95
    %v443 = vpop.permute.xlu0 %442
    %444 = vrot.lane.b32.xlu0 %v63, 95
    %v445 = vpop.permute.xlu0 %444
    %vm446 = vcmask 777216
    %v447 = vsel %vm446, %v429, %v431
    %v448 = vsel %vm446, %v431, %v433
    %v449 = vsel %vm446, %v433, %v435
    %v450 = vsel %vm446, %v435, %v437
    %v451 = vsel %vm446, %v437, %v439
    %v452 = vsel %vm446, %v439, %v441
    %v453 = vsel %vm446, %v441, %v443
    %v454 = vsel %vm446, %v443, %v445
    %v455 = vsel %vm446, %v445, %v437
    %466 = vst [vmem:[#allocation2 + $0x140] sm:$0xf] %v447
    %467 = vst [vmem:[#allocation2 + $0x148] sm:$0xf] %v448
    %468 = vst [vmem:[#allocation2 + $0x150] sm:$0xf] %v449
    %469 = vst [vmem:[#allocation2 + $0x158] sm:$0xf] %v450
    %470 = vst [vmem:[#allocation2 + $0x160] sm:$0xf] %v451
    %471 = vst [vmem:[#allocation2 + $0x168] sm:$0xf] %v452
    %472 = vst [vmem:[#allocation2 + $0x170] sm:$0xf] %v453
    %473 = vst [vmem:[#allocation2 + $0x178] sm:$0xf] %v454
    %474 = vst [vmem:[#allocation2 + $0x180] sm:$0xf] %v455
    %475 = vst [vmem:[#allocation2 + $0x188] sm:$0xf] %v437
    %v476 = vld [vmem:[%s1] sm:$0xf]
    %v477 = vld [vmem:[#allocation2] sm:$0xff]
    %v478 = vld [vmem:[#allocation2 + $0x8] sm:$0xff]
    %v479 = vld [vmem:[#allocation2 + $0x10] sm:$0xff]
    %v480 = vld [vmem:[#allocation2 + $0x18] sm:$0xff]
    %v481 = vld [vmem:[#allocation2 + $0x20] sm:$0xff]
    %v482 = vld [vmem:[#allocation2 + $0x28] sm:$0xff]
    %v483 = vld [vmem:[#allocation2 + $0x30] sm:$0xff]
    %v484 = vld [vmem:[#allocation2 + $0x38] sm:$0xff]
    %v485 = vld [vmem:[#allocation2 + $0x40] sm:$0xff]
    %v486 = vld [vmem:[#allocation2 + $0x48] sm:$0xff]
    %v487 = vld [vmem:[#allocation2 + $0x50] sm:$0xff]
    %v488 = vld [vmem:[#allocation2 + $0x58] sm:$0xff]
    %v489 = vld [vmem:[#allocation2 + $0x60] sm:$0xff]
    %v490 = vld [vmem:[#allocation2 + $0x68] sm:$0xff]
    %v491 = vld [vmem:[#allocation2 + $0x70] sm:$0xff]
    %v492 = vld [vmem:[#allocation2 + $0x78] sm:$0xff]
    %v493 = vld [vmem:[#allocation2 + $0x80] sm:$0xff]
    %v494 = vld [vmem:[#allocation2 + $0x88] sm:$0xff]
    %v495 = vld [vmem:[#allocation2 + $0x90] sm:$0xff]
    %v496 = vld [vmem:[#allocation2 + $0x98] sm:$0xff]
    %v497 = vld [vmem:[#allocation2 + $0xa0] sm:$0xff]
    %v498 = vld [vmem:[#allocation2 + $0xa8] sm:$0xff]
    %v499 = vld [vmem:[#allocation2 + $0xb0] sm:$0xff]
    %v500 = vld [vmem:[#allocation2 + $0xb8] sm:$0xff]
    %v501 = vld [vmem:[#allocation2 + $0xc0] sm:$0xff]
    %v502 = vld [vmem:[#allocation2 + $0xc8] sm:$0xff]
    %v503 = vld [vmem:[#allocation2 + $0xd0] sm:$0xff]
    %v504 = vld [vmem:[#allocation2 + $0xd8] sm:$0xff]
    %v505 = vld [vmem:[#allocation2 + $0xe0] sm:$0xff]
    %v506 = vld [vmem:[#allocation2 + $0xe8] sm:$0xff]
    %v507 = vld [vmem:[#allocation2 + $0xf0] sm:$0xff]
    %v508 = vld [vmem:[#allocation2 + $0xf8] sm:$0xff]
    %v509 = vld [vmem:[#allocation2 + $0x100] sm:$0xff]
    %v510 = vld [vmem:[#allocation2 + $0x108] sm:$0xff]
    %v511 = vld [vmem:[#allocation2 + $0x110] sm:$0xff]
    %v512 = vld [vmem:[#allocation2 + $0x118] sm:$0xff]
    %v513 = vld [vmem:[#allocation2 + $0x120] sm:$0xff]
    %v514 = vld [vmem:[#allocation2 + $0x128] sm:$0xff]
    %v515 = vld [vmem:[#allocation2 + $0x130] sm:$0xff]
    %v516 = vld [vmem:[#allocation2 + $0x138] sm:$0xff]
    %v517 = vld [vmem:[#allocation2 + $0x140] sm:$0xf]
    %v518 = vld [vmem:[#allocation2 + $0x148] sm:$0xf]
    %v519 = vld [vmem:[#allocation2 + $0x150] sm:$0xf]
    %v520 = vld [vmem:[#allocation2 + $0x158] sm:$0xf]
    %v521 = vld [vmem:[#allocation2 + $0x160] sm:$0xf]
    %v522 = vld [vmem:[#allocation2 + $0x168] sm:$0xf]
    %v523 = vld [vmem:[#allocation2 + $0x170] sm:$0xf]
    %v524 = vld [vmem:[#allocation2 + $0x178] sm:$0xf]
    %v525 = vld [vmem:[#allocation2 + $0x180] sm:$0xf]
    %v526 = vld [vmem:[#allocation2 + $0x188] sm:$0xf]
    %v527 = vld [vmem:[%s2] sm:$0xf]
    %529 = vset.pattern.permute.xlu0 0
    %530 = vperm.xlu0 %529, %v527
    %v531 = vpop.permute.xlu0 %530
    %vm533 = vcmask 293888
    %v535 = vsel %vm533, %v476, 0
    %vm537 = vcmask 1043456
    %v539 = vsel %vm537, %v517, 0
    %v542 = vsel %vm537, %v518, 0
    %v545 = vsel %vm537, %v519, 0
    %v548 = vsel %vm537, %v520, 0
    %v551 = vsel %vm537, %v521, 0
    %v554 = vsel %vm537, %v522, 0
    %v557 = vsel %vm537, %v523, 0
    %v560 = vsel %vm537, %v524, 0
    %v563 = vsel %vm537, %v525, 0
    %v566 = vsel %vm537, %v526, 0
    %568 = vmatpush.msra.mxu0 0.0
    %569 = vmatpush.msra.mxu0 0.0
    %570 = vmatpush.msra.mxu0 0.0
    %571 = vmatpush.msra.mxu0 0.0
    %572 = vmatpush.msra.mxu0 0.0
    %573 = vmatpush.msra.mxu0 0.0
    %574 = vmatpush.msra.mxu0 0.0
    %575 = vmatpush.msra.mxu0 0.0
    %576 = vmatpush.msra.mxu0 0.0
    %577 = vmatpush.msra.mxu0 0.0
    %578 = vmatpush.msra.mxu0 0.0
    %579 = vmatpush.msra.mxu0 %v539
    %580 = vmatpush.msra.mxu0 %v507
    %581 = vmatpush.msra.mxu0 %v497
    %582 = vmatpush.msra.mxu0 %v487
    %583 = vmatpush.msra.mxu0 %v477
    %584 = vmatmul.f32.gmra.mxu0 %v535
    %v585 = vpop.f32.mrf.mxu0
    %v586 = vadd.f32 %v531, %v585
    %587 = vdwg.mxu0
    %588 = vmatpush.msra.mxu0 0.0
    %589 = vmatpush.msra.mxu0 0.0
    %590 = vmatpush.msra.mxu0 0.0
    %591 = vmatpush.msra.mxu0 0.0
    %592 = vmatpush.msra.mxu0 0.0
    %593 = vmatpush.msra.mxu0 0.0
    %594 = vmatpush.msra.mxu0 0.0
    %595 = vmatpush.msra.mxu0 0.0
    %596 = vmatpush.msra.mxu0 0.0
    %597 = vmatpush.msra.mxu0 0.0
    %598 = vmatpush.msra.mxu0 0.0
    %599 = vmatpush.msra.mxu0 %v542
    %600 = vmatpush.msra.mxu0 %v508
    %601 = vmatpush.msra.mxu0 %v498
    %602 = vmatpush.msra.mxu0 %v488
    %603 = vmatpush.msra.mxu0 %v478
    %604 = vmatmul.f32.gmra.mxu0 %v535
    %v605 = vpop.f32.mrf.mxu0
    %v606 = vadd.f32 %v531, %v605
    %607 = vdwg.mxu0
    %608 = vmatpush.msra.mxu0 0.0
    %609 = vmatpush.msra.mxu0 0.0
    %610 = vmatpush.msra.mxu0 0.0
    %611 = vmatpush.msra.mxu0 0.0
    %612 = vmatpush.msra.mxu0 0.0
    %613 = vmatpush.msra.mxu0 0.0
    %614 = vmatpush.msra.mxu0 0.0
    %615 = vmatpush.msra.mxu0 0.0
    %616 = vmatpush.msra.mxu0 0.0
    %617 = vmatpush.msra.mxu0 0.0
    %618 = vmatpush.msra.mxu0 0.0
    %619 = vmatpush.msra.mxu0 %v545
    %620 = vmatpush.msra.mxu0 %v509
    %621 = vmatpush.msra.mxu0 %v499
    %622 = vmatpush.msra.mxu0 %v489
    %623 = vmatpush.msra.mxu0 %v479
    %624 = vmatmul.f32.gmra.mxu0 %v535
    %v625 = vpop.f32.mrf.mxu0
    %v626 = vadd.f32 %v531, %v625
    %627 = vdwg.mxu0
    %628 = vmatpush.msra.mxu0 0.0
    %629 = vmatpush.msra.mxu0 0.0
    %630 = vmatpush.msra.mxu0 0.0
    %631 = vmatpush.msra.mxu0 0.0
    %632 = vmatpush.msra.mxu0 0.0
    %633 = vmatpush.msra.mxu0 0.0
    %634 = vmatpush.msra.mxu0 0.0
    %635 = vmatpush.msra.mxu0 0.0
    %636 = vmatpush.msra.mxu0 0.0
    %637 = vmatpush.msra.mxu0 0.0
    %638 = vmatpush.msra.mxu0 0.0
    %639 = vmatpush.msra.mxu0 %v548
    %640 = vmatpush.msra.mxu0 %v510
    %641 = vmatpush.msra.mxu0 %v500
    %642 = vmatpush.msra.mxu0 %v490
    %643 = vmatpush.msra.mxu0 %v480
    %644 = vmatmul.f32.gmra.mxu0 %v535
    %v645 = vpop.f32.mrf.mxu0
    %v646 = vadd.f32 %v531, %v645
    %647 = vdwg.mxu0
    %648 = vmatpush.msra.mxu0 0.0
    %649 = vmatpush.msra.mxu0 0.0
    %650 = vmatpush.msra.mxu0 0.0
    %651 = vmatpush.msra.mxu0 0.0
    %652 = vmatpush.msra.mxu0 0.0
    %653 = vmatpush.msra.mxu0 0.0
    %654 = vmatpush.msra.mxu0 0.0
    %655 = vmatpush.msra.mxu0 0.0
    %656 = vmatpush.msra.mxu0 0.0
    %657 = vmatpush.msra.mxu0 0.0
    %658 = vmatpush.msra.mxu0 0.0
    %659 = vmatpush.msra.mxu0 %v551
    %660 = vmatpush.msra.mxu0 %v511
    %661 = vmatpush.msra.mxu0 %v501
    %662 = vmatpush.msra.mxu0 %v491
    %663 = vmatpush.msra.mxu0 %v481
    %664 = vmatmul.f32.gmra.mxu0 %v535
    %v665 = vpop.f32.mrf.mxu0
    %v666 = vadd.f32 %v531, %v665
    %667 = vdwg.mxu0
    %668 = vmatpush.msra.mxu0 0.0
    %669 = vmatpush.msra.mxu0 0.0
    %670 = vmatpush.msra.mxu0 0.0
    %671 = vmatpush.msra.mxu0 0.0
    %672 = vmatpush.msra.mxu0 0.0
    %673 = vmatpush.msra.mxu0 0.0
    %674 = vmatpush.msra.mxu0 0.0
    %675 = vmatpush.msra.mxu0 0.0
    %676 = vmatpush.msra.mxu0 0.0
    %677 = vmatpush.msra.mxu0 0.0
    %678 = vmatpush.msra.mxu0 0.0
    %679 = vmatpush.msra.mxu0 %v554
    %680 = vmatpush.msra.mxu0 %v512
    %681 = vmatpush.msra.mxu0 %v502
    %682 = vmatpush.msra.mxu0 %v492
    %683 = vmatpush.msra.mxu0 %v482
    %684 = vmatmul.f32.gmra.mxu0 %v535
    %v685 = vpop.f32.mrf.mxu0
    %v686 = vadd.f32 %v531, %v685
    %687 = vdwg.mxu0
    %688 = vmatpush.msra.mxu0 0.0
    %689 = vmatpush.msra.mxu0 0.0
    %690 = vmatpush.msra.mxu0 0.0
    %691 = vmatpush.msra.mxu0 0.0
    %692 = vmatpush.msra.mxu0 0.0
    %693 = vmatpush.msra.mxu0 0.0
    %694 = vmatpush.msra.mxu0 0.0
    %695 = vmatpush.msra.mxu0 0.0
    %696 = vmatpush.msra.mxu0 0.0
    %697 = vmatpush.msra.mxu0 0.0
    %698 = vmatpush.msra.mxu0 0.0
    %699 = vmatpush.msra.mxu0 %v557
    %700 = vmatpush.msra.mxu0 %v513
    %701 = vmatpush.msra.mxu0 %v503
    %702 = vmatpush.msra.mxu0 %v493
    %703 = vmatpush.msra.mxu0 %v483
    %704 = vmatmul.f32.gmra.mxu0 %v535
    %v705 = vpop.f32.mrf.mxu0
    %v706 = vadd.f32 %v531, %v705
    %707 = vdwg.mxu0
    %708 = vmatpush.msra.mxu0 0.0
    %709 = vmatpush.msra.mxu0 0.0
    %710 = vmatpush.msra.mxu0 0.0
    %711 = vmatpush.msra.mxu0 0.0
    %712 = vmatpush.msra.mxu0 0.0
    %713 = vmatpush.msra.mxu0 0.0
    %714 = vmatpush.msra.mxu0 0.0
    %715 = vmatpush.msra.mxu0 0.0
    %716 = vmatpush.msra.mxu0 0.0
    %717 = vmatpush.msra.mxu0 0.0
    %718 = vmatpush.msra.mxu0 0.0
    %719 = vmatpush.msra.mxu0 %v560
    %720 = vmatpush.msra.mxu0 %v514
    %721 = vmatpush.msra.mxu0 %v504
    %722 = vmatpush.msra.mxu0 %v494
    %723 = vmatpush.msra.mxu0 %v484
    %724 = vmatmul.f32.gmra.mxu0 %v535
    %v725 = vpop.f32.mrf.mxu0
    %v726 = vadd.f32 %v531, %v725
    %727 = vdwg.mxu0
    %728 = vmatpush.msra.mxu0 0.0
    %729 = vmatpush.msra.mxu0 0.0
    %730 = vmatpush.msra.mxu0 0.0
    %731 = vmatpush.msra.mxu0 0.0
    %732 = vmatpush.msra.mxu0 0.0
    %733 = vmatpush.msra.mxu0 0.0
    %734 = vmatpush.msra.mxu0 0.0
    %735 = vmatpush.msra.mxu0 0.0
    %736 = vmatpush.msra.mxu0 0.0
    %737 = vmatpush.msra.mxu0 0.0
    %738 = vmatpush.msra.mxu0 0.0
    %739 = vmatpush.msra.mxu0 %v563
    %740 = vmatpush.msra.mxu0 %v515
    %741 = vmatpush.msra.mxu0 %v505
    %742 = vmatpush.msra.mxu0 %v495
    %743 = vmatpush.msra.mxu0 %v485
    %744 = vmatmul.f32.gmra.mxu0 %v535
    %v745 = vpop.f32.mrf.mxu0
    %v746 = vadd.f32 %v531, %v745
    %747 = vdwg.mxu0
    %748 = vmatpush.msra.mxu0 0.0
    %749 = vmatpush.msra.mxu0 0.0
    %750 = vmatpush.msra.mxu0 0.0
    %751 = vmatpush.msra.mxu0 0.0
    %752 = vmatpush.msra.mxu0 0.0
    %753 = vmatpush.msra.mxu0 0.0
    %754 = vmatpush.msra.mxu0 0.0
    %755 = vmatpush.msra.mxu0 0.0
    %756 = vmatpush.msra.mxu0 0.0
    %757 = vmatpush.msra.mxu0 0.0
    %758 = vmatpush.msra.mxu0 0.0
    %759 = vmatpush.msra.mxu0 %v566
    %760 = vmatpush.msra.mxu0 %v516
    %761 = vmatpush.msra.mxu0 %v506
    %762 = vmatpush.msra.mxu0 %v496
    %763 = vmatpush.msra.mxu0 %v486
    %764 = vmatmul.f32.gmra.mxu0 %v535
    %v765 = vpop.f32.mrf.mxu0
    %v766 = vadd.f32 %v531, %v765
    %767 = vdwg.mxu0
    %v768 = vmax.f32 %v586, 0.0
    %v769 = vmax.f32 %v606, 0.0
    %v770 = vmax.f32 %v626, 0.0
    %v771 = vmax.f32 %v646, 0.0
    %v772 = vmax.f32 %v666, 0.0
    %v773 = vmax.f32 %v686, 0.0
    %v774 = vmax.f32 %v706, 0.0
    %v775 = vmax.f32 %v726, 0.0
    %v776 = vmax.f32 %v746, 0.0
    %v777 = vmax.f32 %v766, 0.0
    %v778 = vlaneseq
    %v779 = vand.u32 %v778, 127
    %v780 = vadd.s32 %v779, 128
    %v781 = vadd.s32 %v779, 256
    %v782 = vadd.s32 %v779, 384
    %v783 = vadd.s32 %v779, 512
    %v784 = vadd.s32 %v779, 640
    %v785 = vadd.s32 %v779, 768
    %v786 = vadd.s32 %v779, 896
    %v787 = vadd.s32 %v779, 1024
    %v788 = vadd.s32 %v779, 1152
    %v789 = vand.u32 %v779, 31
    %v790 = vand.u32 %v780, 31
    %v791 = vand.u32 %v781, 31
    %v792 = vand.u32 %v782, 31
    %v793 = vand.u32 %v783, 31
    %v794 = vand.u32 %v784, 31
    %v795 = vand.u32 %v785, 31
    %v796 = vand.u32 %v786, 31
    %v797 = vand.u32 %v787, 31
    %v798 = vand.u32 %v788, 31
    %vm799 = vcmp.lt.s32.totalorder %v789, 16
    %vm800 = vcmp.lt.s32.totalorder %v790, 16
    %vm801 = vcmp.lt.s32.totalorder %v791, 16
    %vm802 = vcmp.lt.s32.totalorder %v792, 16
    %vm803 = vcmp.lt.s32.totalorder %v793, 16
    %vm804 = vcmp.lt.s32.totalorder %v794, 16
    %vm805 = vcmp.lt.s32.totalorder %v795, 16
    %vm806 = vcmp.lt.s32.totalorder %v796, 16
    %vm807 = vcmp.lt.s32.totalorder %v797, 16
    %vm808 = vcmp.lt.s32.totalorder %v798, 16
    %vm809 = vcmp.ge.s32.totalorder %v779, 0
    %vm810 = vcmp.ge.s32.totalorder %v780, 0
    %vm811 = vcmp.ge.s32.totalorder %v781, 0
    %vm812 = vcmp.ge.s32.totalorder %v782, 0
    %vm813 = vcmp.ge.s32.totalorder %v783, 0
    %vm814 = vcmp.ge.s32.totalorder %v784, 0
    %vm815 = vcmp.ge.s32.totalorder %v785, 0
    %vm816 = vcmp.ge.s32.totalorder %v786, 0
    %vm817 = vcmp.ge.s32.totalorder %v787, 0
    %vm818 = vcmp.ge.s32.totalorder %v788, 0
    %vm819 = vcmp.lt.s32.totalorder %v779, 512
    %vm820 = vcmp.lt.s32.totalorder %v780, 512
    %vm821 = vcmp.lt.s32.totalorder %v781, 512
    %vm822 = vcmp.lt.s32.totalorder %v782, 512
    %vm823 = vcmp.lt.s32.totalorder %v783, 512
    %vm824 = vcmp.lt.s32.totalorder %v784, 512
    %vm825 = vcmp.lt.s32.totalorder %v785, 512
    %vm826 = vcmp.lt.s32.totalorder %v786, 512
    %vm827 = vcmp.lt.s32.totalorder %v787, 512
    %vm828 = vcmp.lt.s32.totalorder %v788, 512
    %vm829 = vmand %vm809, %vm819
    %vm830 = vmand %vm810, %vm820
    %vm831 = vmand %vm811, %vm821
    %vm832 = vmand %vm812, %vm822
    %vm833 = vmand %vm813, %vm823
    %vm834 = vmand %vm814, %vm824
    %vm835 = vmand %vm815, %vm825
    %vm836 = vmand %vm816, %vm826
    %vm837 = vmand %vm817, %vm827
    %vm838 = vmand %vm818, %vm828
    %vm839 = vcmp.ge.s32.totalorder %v779, 640
    %vm840 = vcmp.ge.s32.totalorder %v780, 640
    %vm841 = vcmp.ge.s32.totalorder %v781, 640
    %vm842 = vcmp.ge.s32.totalorder %v782, 640
    %vm843 = vcmp.ge.s32.totalorder %v783, 640
    %vm844 = vcmp.ge.s32.totalorder %v784, 640
    %vm845 = vcmp.ge.s32.totalorder %v785, 640
    %vm846 = vcmp.ge.s32.totalorder %v786, 640
    %vm847 = vcmp.ge.s32.totalorder %v787, 640
    %vm848 = vcmp.ge.s32.totalorder %v788, 640
    %vm849 = vcmp.lt.s32.totalorder %v779, 1152
    %vm850 = vcmp.lt.s32.totalorder %v780, 1152
    %vm851 = vcmp.lt.s32.totalorder %v781, 1152
    %vm852 = vcmp.lt.s32.totalorder %v782, 1152
    %vm853 = vcmp.lt.s32.totalorder %v783, 1152
    %vm854 = vcmp.lt.s32.totalorder %v784, 1152
    %vm855 = vcmp.lt.s32.totalorder %v785, 1152
    %vm856 = vcmp.lt.s32.totalorder %v786, 1152
    %vm857 = vcmp.lt.s32.totalorder %v787, 1152
    %vm858 = vcmp.lt.s32.totalorder %v788, 1152
    %vm859 = vmand %vm839, %vm849
    %vm860 = vmand %vm840, %vm850
    %vm861 = vmand %vm841, %vm851
    %vm862 = vmand %vm842, %vm852
    %vm863 = vmand %vm843, %vm853
    %vm864 = vmand %vm844, %vm854
    %vm865 = vmand %vm845, %vm855
    %vm866 = vmand %vm846, %vm856
    %vm867 = vmand %vm847, %vm857
    %vm868 = vmand %vm848, %vm858
    %vm869 = vmor %vm829, %vm859
    %vm870 = vmor %vm830, %vm860
    %vm871 = vmor %vm831, %vm861
    %vm872 = vmor %vm832, %vm862
    %vm873 = vmor %vm833, %vm863
    %vm874 = vmor %vm834, %vm864
    %vm875 = vmor %vm835, %vm865
    %vm876 = vmor %vm836, %vm866
    %vm877 = vmor %vm837, %vm867
    %vm878 = vmor %vm838, %vm868
    %vm879 = vmand %vm799, %vm869
    %vm880 = vmand %vm800, %vm870
    %vm881 = vmand %vm801, %vm871
    %vm882 = vmand %vm802, %vm872
    %vm883 = vmand %vm803, %vm873
    %vm884 = vmand %vm804, %vm874
    %vm885 = vmand %vm805, %vm875
    %vm886 = vmand %vm806, %vm876
    %vm887 = vmand %vm807, %vm877
    %vm888 = vmand %vm808, %vm878
    %v889 = vsel %vm879, 1, 0
    %v890 = vsel %vm880, 1, 0
    %v891 = vsel %vm881, 1, 0
    %v892 = vsel %vm882, 1, 0
    %v893 = vsel %vm883, 1, 0
    %v894 = vsel %vm884, 1, 0
    %v895 = vsel %vm885, 1, 0
    %v896 = vsel %vm886, 1, 0
    %v897 = vsel %vm887, 1, 0
    %v898 = vsel %vm888, 1, 0
    %vm899 = vcmp.eq.s32.totalorder %v889, 1
    %vm900 = vcmp.eq.s32.totalorder %v890, 1
    %vm901 = vcmp.eq.s32.totalorder %v891, 1
    %vm902 = vcmp.eq.s32.totalorder %v892, 1
    %vm903 = vcmp.eq.s32.totalorder %v893, 1
    %vm904 = vcmp.eq.s32.totalorder %v894, 1
    %vm905 = vcmp.eq.s32.totalorder %v895, 1
    %vm906 = vcmp.eq.s32.totalorder %v896, 1
    %vm907 = vcmp.eq.s32.totalorder %v897, 1
    %vm908 = vcmp.eq.s32.totalorder %v898, 1
    %v909 = vsel %vm899, %v768, 0.0
    %v910 = vsel %vm900, %v769, 0.0
    %v911 = vsel %vm901, %v770, 0.0
    %v912 = vsel %vm902, %v771, 0.0
    %v913 = vsel %vm903, %v772, 0.0
    %v914 = vsel %vm904, %v773, 0.0
    %v915 = vsel %vm905, %v774, 0.0
    %v916 = vsel %vm906, %v775, 0.0
    %v917 = vsel %vm907, %v776, 0.0
    %v918 = vsel %vm908, %v777, 0.0
    %929 = vrot.lane.b32.xlu0 %v909, 33
    %v930 = vpop.permute.xlu0 %929
    %931 = vrot.lane.b32.xlu0 %v910, 33
    %v932 = vpop.permute.xlu0 %931
    %933 = vrot.lane.b32.xlu0 %v911, 33
    %v934 = vpop.permute.xlu0 %933
    %935 = vrot.lane.b32.xlu0 %v912, 33
    %v936 = vpop.permute.xlu0 %935
    %937 = vrot.lane.b32.xlu0 %v913, 33
    %v938 = vpop.permute.xlu0 %937
    %939 = vrot.lane.b32.xlu0 %v914, 33
    %v940 = vpop.permute.xlu0 %939
    %941 = vrot.lane.b32.xlu0 %v915, 33
    %v942 = vpop.permute.xlu0 %941
    %943 = vrot.lane.b32.xlu0 %v916, 33
    %v944 = vpop.permute.xlu0 %943
    %945 = vrot.lane.b32.xlu0 %v917, 33
    %v946 = vpop.permute.xlu0 %945
    %947 = vrot.lane.b32.xlu0 %v918, 33
    %v948 = vpop.permute.xlu0 %947
    %v949 = vsel %vm87, %v70, %v930
    %v950 = vsel %vm87, %v930, %v932
    %v951 = vsel %vm87, %v932, %v934
    %v952 = vsel %vm87, %v934, %v936
    %v953 = vsel %vm87, %v936, %v938
    %v954 = vsel %vm87, %v938, %v940
    %v955 = vsel %vm87, %v940, %v942
    %v956 = vsel %vm87, %v942, %v944
    %v957 = vsel %vm87, %v944, %v946
    %v958 = vsel %vm87, %v946, %v948
    %969 = vst [vmem:[#allocation2] sm:$0xf] %v949
    %970 = vst [vmem:[#allocation2 + $0x8] sm:$0xf] %v950
    %971 = vst [vmem:[#allocation2 + $0x10] sm:$0xf] %v951
    %972 = vst [vmem:[#allocation2 + $0x18] sm:$0xf] %v952
    %973 = vst [vmem:[#allocation2 + $0x20] sm:$0xf] %v953
    %974 = vst [vmem:[#allocation2 + $0x28] sm:$0xf] %v954
    %975 = vst [vmem:[#allocation2 + $0x30] sm:$0xf] %v955
    %976 = vst [vmem:[#allocation2 + $0x38] sm:$0xf] %v956
    %977 = vst [vmem:[#allocation2 + $0x40] sm:$0xf] %v957
    %978 = vst [vmem:[#allocation2 + $0x48] sm:$0xf] %v958
    %v979 = vrot.slane %v909, 4
    %v980 = vrot.slane %v910, 4
    %v981 = vrot.slane %v911, 4
    %v982 = vrot.slane %v912, 4
    %v983 = vrot.slane %v913, 4
    %v984 = vrot.slane %v914, 4
    %v985 = vrot.slane %v915, 4
    %v986 = vrot.slane %v916, 4
    %v987 = vrot.slane %v917, 4
    %v988 = vrot.slane %v918, 4
    %989 = vrot.lane.b32.xlu0 %v979, 32
    %v990 = vpop.permute.xlu0 %989
    %991 = vrot.lane.b32.xlu0 %v980, 32
    %v992 = vpop.permute.xlu0 %991
    %993 = vrot.lane.b32.xlu0 %v981, 32
    %v994 = vpop.permute.xlu0 %993
    %995 = vrot.lane.b32.xlu0 %v982, 32
    %v996 = vpop.permute.xlu0 %995
    %997 = vrot.lane.b32.xlu0 %v983, 32
    %v998 = vpop.permute.xlu0 %997
    %999 = vrot.lane.b32.xlu0 %v984, 32
    %v1000 = vpop.permute.xlu0 %999
    %1001 = vrot.lane.b32.xlu0 %v985, 32
    %v1002 = vpop.permute.xlu0 %1001
    %1003 = vrot.lane.b32.xlu0 %v986, 32
    %v1004 = vpop.permute.xlu0 %1003
    %1005 = vrot.lane.b32.xlu0 %v987, 32
    %v1006 = vpop.permute.xlu0 %1005
    %1007 = vrot.lane.b32.xlu0 %v988, 32
    %v1008 = vpop.permute.xlu0 %1007
    %v1009 = vsel %vm145, %v128, %v990
    %v1010 = vsel %vm145, %v990, %v992
    %v1011 = vsel %vm145, %v992, %v994
    %v1012 = vsel %vm145, %v994, %v996
    %v1013 = vsel %vm145, %v996, %v998
    %v1014 = vsel %vm145, %v998, %v1000
    %v1015 = vsel %vm145, %v1000, %v1002
    %v1016 = vsel %vm145, %v1002, %v1004
    %v1017 = vsel %vm145, %v1004, %v1006
    %v1018 = vsel %vm145, %v1006, %v1008
    %1029 = vst [vmem:[#allocation2] sm:$0xf0] %v1009
    %1030 = vst [vmem:[#allocation2 + $0x8] sm:$0xf0] %v1010
    %1031 = vst [vmem:[#allocation2 + $0x10] sm:$0xf0] %v1011
    %1032 = vst [vmem:[#allocation2 + $0x18] sm:$0xf0] %v1012
    %1033 = vst [vmem:[#allocation2 + $0x20] sm:$0xf0] %v1013
    %1034 = vst [vmem:[#allocation2 + $0x28] sm:$0xf0] %v1014
    %1035 = vst [vmem:[#allocation2 + $0x30] sm:$0xf0] %v1015
    %1036 = vst [vmem:[#allocation2 + $0x38] sm:$0xf0] %v1016
    %1037 = vst [vmem:[#allocation2 + $0x40] sm:$0xf0] %v1017
    %1038 = vst [vmem:[#allocation2 + $0x48] sm:$0xf0] %v1018
    %1039 = vrot.lane.b32.xlu0 %v909, 31
    %v1040 = vpop.permute.xlu0 %1039
    %1041 = vrot.lane.b32.xlu0 %v910, 31
    %v1042 = vpop.permute.xlu0 %1041
    %1043 = vrot.lane.b32.xlu0 %v911, 31
    %v1044 = vpop.permute.xlu0 %1043
    %1045 = vrot.lane.b32.xlu0 %v912, 31
    %v1046 = vpop.permute.xlu0 %1045
    %1047 = vrot.lane.b32.xlu0 %v913, 31
    %v1048 = vpop.permute.xlu0 %1047
    %1049 = vrot.lane.b32.xlu0 %v914, 31
    %v1050 = vpop.permute.xlu0 %1049
    %1051 = vrot.lane.b32.xlu0 %v915, 31
    %v1052 = vpop.permute.xlu0 %1051
    %1053 = vrot.lane.b32.xlu0 %v916, 31
    %v1054 = vpop.permute.xlu0 %1053
    %1055 = vrot.lane.b32.xlu0 %v917, 31
    %v1056 = vpop.permute.xlu0 %1055
    %1057 = vrot.lane.b32.xlu0 %v918, 31
    %v1058 = vpop.permute.xlu0 %1057
    %v1059 = vsel %vm194, %v177, %v1040
    %v1060 = vsel %vm194, %v1040, %v1042
    %v1061 = vsel %vm194, %v1042, %v1044
    %v1062 = vsel %vm194, %v1044, %v1046
    %v1063 = vsel %vm194, %v1046, %v1048
    %v1064 = vsel %vm194, %v1048, %v1050
    %v1065 = vsel %vm194, %v1050, %v1052
    %v1066 = vsel %vm194, %v1052, %v1054
    %v1067 = vsel %vm194, %v1054, %v1056
    %v1068 = vsel %vm194, %v1056, %v1058
    %1079 = vst [vmem:[#allocation2 + $0x50] sm:$0xf] %v1059
    %1080 = vst [vmem:[#allocation2 + $0x58] sm:$0xf] %v1060
    %1081 = vst [vmem:[#allocation2 + $0x60] sm:$0xf] %v1061
    %1082 = vst [vmem:[#allocation2 + $0x68] sm:$0xf] %v1062
    %1083 = vst [vmem:[#allocation2 + $0x70] sm:$0xf] %v1063
    %1084 = vst [vmem:[#allocation2 + $0x78] sm:$0xf] %v1064
    %1085 = vst [vmem:[#allocation2 + $0x80] sm:$0xf] %v1065
    %1086 = vst [vmem:[#allocation2 + $0x88] sm:$0xf] %v1066
    %1087 = vst [vmem:[#allocation2 + $0x90] sm:$0xf] %v1067
    %1088 = vst [vmem:[#allocation2 + $0x98] sm:$0xf] %v1068
    %1089 = vrot.lane.b32.xlu0 %v979, 1
    %v1090 = vpop.permute.xlu0 %1089
    %1091 = vrot.lane.b32.xlu0 %v980, 1
    %v1092 = vpop.permute.xlu0 %1091
    %1093 = vrot.lane.b32.xlu0 %v981, 1
    %v1094 = vpop.permute.xlu0 %1093
    %1095 = vrot.lane.b32.xlu0 %v982, 1
    %v1096 = vpop.permute.xlu0 %1095
    %1097 = vrot.lane.b32.xlu0 %v983, 1
    %v1098 = vpop.permute.xlu0 %1097
    %1099 = vrot.lane.b32.xlu0 %v984, 1
    %v1100 = vpop.permute.xlu0 %1099
    %1101 = vrot.lane.b32.xlu0 %v985, 1
    %v1102 = vpop.permute.xlu0 %1101
    %1103 = vrot.lane.b32.xlu0 %v986, 1
    %v1104 = vpop.permute.xlu0 %1103
    %1105 = vrot.lane.b32.xlu0 %v987, 1
    %v1106 = vpop.permute.xlu0 %1105
    %1107 = vrot.lane.b32.xlu0 %v988, 1
    %v1108 = vpop.permute.xlu0 %1107
    %v1109 = vsel %vm243, %v226, %v1090
    %v1110 = vsel %vm243, %v1090, %v1092
    %v1111 = vsel %vm243, %v1092, %v1094
    %v1112 = vsel %vm243, %v1094, %v1096
    %v1113 = vsel %vm243, %v1096, %v1098
    %v1114 = vsel %vm243, %v1098, %v1100
    %v1115 = vsel %vm243, %v1100, %v1102
    %v1116 = vsel %vm243, %v1102, %v1104
    %v1117 = vsel %vm243, %v1104, %v1106
    %v1118 = vsel %vm243, %v1106, %v1108
    %1129 = vst [vmem:[#allocation2 + $0x50] sm:$0xf0] %v1109
    %1130 = vst [vmem:[#allocation2 + $0x58] sm:$0xf0] %v1110
    %1131 = vst [vmem:[#allocation2 + $0x60] sm:$0xf0] %v1111
    %1132 = vst [vmem:[#allocation2 + $0x68] sm:$0xf0] %v1112
    %1133 = vst [vmem:[#allocation2 + $0x70] sm:$0xf0] %v1113
    %1134 = vst [vmem:[#allocation2 + $0x78] sm:$0xf0] %v1114
    %1135 = vst [vmem:[#allocation2 + $0x80] sm:$0xf0] %v1115
    %1136 = vst [vmem:[#allocation2 + $0x88] sm:$0xf0] %v1116
    %1137 = vst [vmem:[#allocation2 + $0x90] sm:$0xf0] %v1117
    %1138 = vst [vmem:[#allocation2 + $0x98] sm:$0xf0] %v1118
    %1139 = vst [vmem:[#allocation2 + $0xa0] sm:$0xf] %v909
    %1140 = vst [vmem:[#allocation2 + $0xa8] sm:$0xf] %v910
    %1141 = vst [vmem:[#allocation2 + $0xb0] sm:$0xf] %v911
    %1142 = vst [vmem:[#allocation2 + $0xb8] sm:$0xf] %v912
    %1143 = vst [vmem:[#allocation2 + $0xc0] sm:$0xf] %v913
    %1144 = vst [vmem:[#allocation2 + $0xc8] sm:$0xf] %v914
    %1145 = vst [vmem:[#allocation2 + $0xd0] sm:$0xf] %v915
    %1146 = vst [vmem:[#allocation2 + $0xd8] sm:$0xf] %v916
    %1147 = vst [vmem:[#allocation2 + $0xe0] sm:$0xf] %v917
    %1148 = vst [vmem:[#allocation2 + $0xe8] sm:$0xf] %v918
    %1149 = vrot.lane.b32.xlu0 %v979, 127
    %v1150 = vpop.permute.xlu0 %1149
    %1151 = vrot.lane.b32.xlu0 %v980, 127
    %v1152 = vpop.permute.xlu0 %1151
    %1153 = vrot.lane.b32.xlu0 %v981, 127
    %v1154 = vpop.permute.xlu0 %1153
    %1155 = vrot.lane.b32.xlu0 %v982, 127
    %v1156 = vpop.permute.xlu0 %1155
    %1157 = vrot.lane.b32.xlu0 %v983, 127
    %v1158 = vpop.permute.xlu0 %1157
    %1159 = vrot.lane.b32.xlu0 %v984, 127
    %v1160 = vpop.permute.xlu0 %1159
    %1161 = vrot.lane.b32.xlu0 %v985, 127
    %v1162 = vpop.permute.xlu0 %1161
    %1163 = vrot.lane.b32.xlu0 %v986, 127
    %v1164 = vpop.permute.xlu0 %1163
    %1165 = vrot.lane.b32.xlu0 %v987, 127
    %v1166 = vpop.permute.xlu0 %1165
    %1167 = vrot.lane.b32.xlu0 %v988, 127
    %v1168 = vpop.permute.xlu0 %1167
    %v1169 = vsel %vm302, %v1150, %v1152
    %v1170 = vsel %vm302, %v1152, %v1154
    %v1171 = vsel %vm302, %v1154, %v1156
    %v1172 = vsel %vm302, %v1156, %v1158
    %v1173 = vsel %vm302, %v1158, %v1160
    %v1174 = vsel %vm302, %v1160, %v1162
    %v1175 = vsel %vm302, %v1162, %v1164
    %v1176 = vsel %vm302, %v1164, %v1166
    %v1177 = vsel %vm302, %v1166, %v1168
    %v1178 = vsel %vm302, %v1168, %v293
    %1189 = vst [vmem:[#allocation2 + $0xa0] sm:$0xf0] %v1169
    %1190 = vst [vmem:[#allocation2 + $0xa8] sm:$0xf0] %v1170
    %1191 = vst [vmem:[#allocation2 + $0xb0] sm:$0xf0] %v1171
    %1192 = vst [vmem:[#allocation2 + $0xb8] sm:$0xf0] %v1172
    %1193 = vst [vmem:[#allocation2 + $0xc0] sm:$0xf0] %v1173
    %1194 = vst [vmem:[#allocation2 + $0xc8] sm:$0xf0] %v1174
    %1195 = vst [vmem:[#allocation2 + $0xd0] sm:$0xf0] %v1175
    %1196 = vst [vmem:[#allocation2 + $0xd8] sm:$0xf0] %v1176
    %1197 = vst [vmem:[#allocation2 + $0xe0] sm:$0xf0] %v1177
    %1198 = vst [vmem:[#allocation2 + $0xe8] sm:$0xf0] %v1178
    %1199 = vrot.lane.b32.xlu0 %v909, 97
    %v1200 = vpop.permute.xlu0 %1199
    %1201 = vrot.lane.b32.xlu0 %v910, 97
    %v1202 = vpop.permute.xlu0 %1201
    %1203 = vrot.lane.b32.xlu0 %v911, 97
    %v1204 = vpop.permute.xlu0 %1203
    %1205 = vrot.lane.b32.xlu0 %v912, 97
    %v1206 = vpop.permute.xlu0 %1205
    %1207 = vrot.lane.b32.xlu0 %v913, 97
    %v1208 = vpop.permute.xlu0 %1207
    %1209 = vrot.lane.b32.xlu0 %v914, 97
    %v1210 = vpop.permute.xlu0 %1209
    %1211 = vrot.lane.b32.xlu0 %v915, 97
    %v1212 = vpop.permute.xlu0 %1211
    %1213 = vrot.lane.b32.xlu0 %v916, 97
    %v1214 = vpop.permute.xlu0 %1213
    %1215 = vrot.lane.b32.xlu0 %v917, 97
    %v1216 = vpop.permute.xlu0 %1215
    %1217 = vrot.lane.b32.xlu0 %v918, 97
    %v1218 = vpop.permute.xlu0 %1217
    %v1219 = vsel %vm350, %v1200, %v1202
    %v1220 = vsel %vm350, %v1202, %v1204
    %v1221 = vsel %vm350, %v1204, %v1206
    %v1222 = vsel %vm350, %v1206, %v1208
    %v1223 = vsel %vm350, %v1208, %v1210
    %v1224 = vsel %vm350, %v1210, %v1212
    %v1225 = vsel %vm350, %v1212, %v1214
    %v1226 = vsel %vm350, %v1214, %v1216
    %v1227 = vsel %vm350, %v1216, %v1218
    %v1228 = vsel %vm350, %v1218, %v341
    %1239 = vst [vmem:[#allocation2 + $0xf0] sm:$0xf] %v1219
    %1240 = vst [vmem:[#allocation2 + $0xf8] sm:$0xf] %v1220
    %1241 = vst [vmem:[#allocation2 + $0x100] sm:$0xf] %v1221
    %1242 = vst [vmem:[#allocation2 + $0x108] sm:$0xf] %v1222
    %1243 = vst [vmem:[#allocation2 + $0x110] sm:$0xf] %v1223
    %1244 = vst [vmem:[#allocation2 + $0x118] sm:$0xf] %v1224
    %1245 = vst [vmem:[#allocation2 + $0x120] sm:$0xf] %v1225
    %1246 = vst [vmem:[#allocation2 + $0x128] sm:$0xf] %v1226
    %1247 = vst [vmem:[#allocation2 + $0x130] sm:$0xf] %v1227
    %1248 = vst [vmem:[#allocation2 + $0x138] sm:$0xf] %v1228
    %1249 = vrot.lane.b32.xlu0 %v979, 96
    %v1250 = vpop.permute.xlu0 %1249
    %1251 = vrot.lane.b32.xlu0 %v980, 96
    %v1252 = vpop.permute.xlu0 %1251
    %1253 = vrot.lane.b32.xlu0 %v981, 96
    %v1254 = vpop.permute.xlu0 %1253
    %1255 = vrot.lane.b32.xlu0 %v982, 96
    %v1256 = vpop.permute.xlu0 %1255
    %1257 = vrot.lane.b32.xlu0 %v983, 96
    %v1258 = vpop.permute.xlu0 %1257
    %1259 = vrot.lane.b32.xlu0 %v984, 96
    %v1260 = vpop.permute.xlu0 %1259
    %1261 = vrot.lane.b32.xlu0 %v985, 96
    %v1262 = vpop.permute.xlu0 %1261
    %1263 = vrot.lane.b32.xlu0 %v986, 96
    %v1264 = vpop.permute.xlu0 %1263
    %1265 = vrot.lane.b32.xlu0 %v987, 96
    %v1266 = vpop.permute.xlu0 %1265
    %1267 = vrot.lane.b32.xlu0 %v988, 96
    %v1268 = vpop.permute.xlu0 %1267
    %v1269 = vsel %vm398, %v1250, %v1252
    %v1270 = vsel %vm398, %v1252, %v1254
    %v1271 = vsel %vm398, %v1254, %v1256
    %v1272 = vsel %vm398, %v1256, %v1258
    %v1273 = vsel %vm398, %v1258, %v1260
    %v1274 = vsel %vm398, %v1260, %v1262
    %v1275 = vsel %vm398, %v1262, %v1264
    %v1276 = vsel %vm398, %v1264, %v1266
    %v1277 = vsel %vm398, %v1266, %v1268
    %v1278 = vsel %vm398, %v1268, %v389
    %1289 = vst [vmem:[#allocation2 + $0xf0] sm:$0xf0] %v1269
    %1290 = vst [vmem:[#allocation2 + $0xf8] sm:$0xf0] %v1270
    %1291 = vst [vmem:[#allocation2 + $0x100] sm:$0xf0] %v1271
    %1292 = vst [vmem:[#allocation2 + $0x108] sm:$0xf0] %v1272
    %1293 = vst [vmem:[#allocation2 + $0x110] sm:$0xf0] %v1273
    %1294 = vst [vmem:[#allocation2 + $0x118] sm:$0xf0] %v1274
    %1295 = vst [vmem:[#allocation2 + $0x120] sm:$0xf0] %v1275
    %1296 = vst [vmem:[#allocation2 + $0x128] sm:$0xf0] %v1276
    %1297 = vst [vmem:[#allocation2 + $0x130] sm:$0xf0] %v1277
    %1298 = vst [vmem:[#allocation2 + $0x138] sm:$0xf0] %v1278
    %1299 = vrot.lane.b32.xlu0 %v909, 95
    %v1300 = vpop.permute.xlu0 %1299
    %1301 = vrot.lane.b32.xlu0 %v910, 95
    %v1302 = vpop.permute.xlu0 %1301
    %1303 = vrot.lane.b32.xlu0 %v911, 95
    %v1304 = vpop.permute.xlu0 %1303
    %1305 = vrot.lane.b32.xlu0 %v912, 95
    %v1306 = vpop.permute.xlu0 %1305
    %1307 = vrot.lane.b32.xlu0 %v913, 95
    %v1308 = vpop.permute.xlu0 %1307
    %1309 = vrot.lane.b32.xlu0 %v914, 95
    %v1310 = vpop.permute.xlu0 %1309
    %1311 = vrot.lane.b32.xlu0 %v915, 95
    %v1312 = vpop.permute.xlu0 %1311
    %1313 = vrot.lane.b32.xlu0 %v916, 95
    %v1314 = vpop.permute.xlu0 %1313
    %1315 = vrot.lane.b32.xlu0 %v917, 95
    %v1316 = vpop.permute.xlu0 %1315
    %1317 = vrot.lane.b32.xlu0 %v918, 95
    %v1318 = vpop.permute.xlu0 %1317
    %v1319 = vsel %vm446, %v1300, %v1302
    %v1320 = vsel %vm446, %v1302, %v1304
    %v1321 = vsel %vm446, %v1304, %v1306
    %v1322 = vsel %vm446, %v1306, %v1308
    %v1323 = vsel %vm446, %v1308, %v1310
    %v1324 = vsel %vm446, %v1310, %v1312
    %v1325 = vsel %vm446, %v1312, %v1314
    %v1326 = vsel %vm446, %v1314, %v1316
    %v1327 = vsel %vm446, %v1316, %v1318
    %v1328 = vsel %vm446, %v1318, %v437
    %1339 = vst [vmem:[#allocation2 + $0x140] sm:$0xf] %v1319
    %1340 = vst [vmem:[#allocation2 + $0x148] sm:$0xf] %v1320
    %1341 = vst [vmem:[#allocation2 + $0x150] sm:$0xf] %v1321
    %1342 = vst [vmem:[#allocation2 + $0x158] sm:$0xf] %v1322
    %1343 = vst [vmem:[#allocation2 + $0x160] sm:$0xf] %v1323
    %1344 = vst [vmem:[#allocation2 + $0x168] sm:$0xf] %v1324
    %1345 = vst [vmem:[#allocation2 + $0x170] sm:$0xf] %v1325
    %1346 = vst [vmem:[#allocation2 + $0x178] sm:$0xf] %v1326
    %1347 = vst [vmem:[#allocation2 + $0x180] sm:$0xf] %v1327
    %1348 = vst [vmem:[#allocation2 + $0x188] sm:$0xf] %v1328
    %v1349 = vld [vmem:[%s3] sm:$0xf]
    %v1350 = vld [vmem:[#allocation2] sm:$0xff]
    %v1351 = vld [vmem:[#allocation2 + $0x8] sm:$0xff]
    %v1352 = vld [vmem:[#allocation2 + $0x10] sm:$0xff]
    %v1353 = vld [vmem:[#allocation2 + $0x18] sm:$0xff]
    %v1354 = vld [vmem:[#allocation2 + $0x28] sm:$0xff]
    %v1355 = vld [vmem:[#allocation2 + $0x30] sm:$0xff]
    %v1356 = vld [vmem:[#allocation2 + $0x38] sm:$0xff]
    %v1357 = vld [vmem:[#allocation2 + $0x40] sm:$0xff]
    %v1358 = vld [vmem:[#allocation2 + $0x50] sm:$0xff]
    %v1359 = vld [vmem:[#allocation2 + $0x58] sm:$0xff]
    %v1360 = vld [vmem:[#allocation2 + $0x60] sm:$0xff]
    %v1361 = vld [vmem:[#allocation2 + $0x68] sm:$0xff]
    %v1362 = vld [vmem:[#allocation2 + $0x78] sm:$0xff]
    %v1363 = vld [vmem:[#allocation2 + $0x80] sm:$0xff]
    %v1364 = vld [vmem:[#allocation2 + $0x88] sm:$0xff]
    %v1365 = vld [vmem:[#allocation2 + $0x90] sm:$0xff]
    %v1366 = vld [vmem:[#allocation2 + $0xa0] sm:$0xff]
    %v1367 = vld [vmem:[#allocation2 + $0xa8] sm:$0xff]
    %v1368 = vld [vmem:[#allocation2 + $0xb0] sm:$0xff]
    %v1369 = vld [vmem:[#allocation2 + $0xb8] sm:$0xff]
    %v1370 = vld [vmem:[#allocation2 + $0xc8] sm:$0xff]
    %v1371 = vld [vmem:[#allocation2 + $0xd0] sm:$0xff]
    %v1372 = vld [vmem:[#allocation2 + $0xd8] sm:$0xff]
    %v1373 = vld [vmem:[#allocation2 + $0xe0] sm:$0xff]
    %v1374 = vld [vmem:[#allocation2 + $0xf0] sm:$0xff]
    %v1375 = vld [vmem:[#allocation2 + $0xf8] sm:$0xff]
    %v1376 = vld [vmem:[#allocation2 + $0x100] sm:$0xff]
    %v1377 = vld [vmem:[#allocation2 + $0x108] sm:$0xff]
    %v1378 = vld [vmem:[#allocation2 + $0x118] sm:$0xff]
    %v1379 = vld [vmem:[#allocation2 + $0x120] sm:$0xff]
    %v1380 = vld [vmem:[#allocation2 + $0x128] sm:$0xff]
    %v1381 = vld [vmem:[#allocation2 + $0x130] sm:$0xff]
    %v1382 = vld [vmem:[#allocation2 + $0x140] sm:$0xf]
    %v1383 = vld [vmem:[#allocation2 + $0x148] sm:$0xf]
    %v1384 = vld [vmem:[#allocation2 + $0x150] sm:$0xf]
    %v1385 = vld [vmem:[#allocation2 + $0x158] sm:$0xf]
    %v1386 = vld [vmem:[#allocation2 + $0x168] sm:$0xf]
    %v1387 = vld [vmem:[#allocation2 + $0x170] sm:$0xf]
    %v1388 = vld [vmem:[#allocation2 + $0x178] sm:$0xf]
    %v1389 = vld [vmem:[#allocation2 + $0x180] sm:$0xf]
    %v1390 = vld [vmem:[%s4] sm:$0xf]
    %1392 = vset.pattern.permute.xlu0 0
    %1393 = vperm.xlu0 %1392, %v1390
    %v1394 = vpop.permute.xlu0 %1393
    %v1397 = vsel %vm533, %v1349, 0
    %v1400 = vsel %vm537, %v1382, 0
    %v1403 = vsel %vm537, %v1383, 0
    %v1406 = vsel %vm537, %v1384, 0
    %v1409 = vsel %vm537, %v1385, 0
    %v1412 = vsel %vm537, %v1386, 0
    %v1415 = vsel %vm537, %v1387, 0
    %v1418 = vsel %vm537, %v1388, 0
    %v1421 = vsel %vm537, %v1389, 0
    %1423 = vmatpush.msra.mxu0 0.0
    %1424 = vmatpush.msra.mxu0 0.0
    %1425 = vmatpush.msra.mxu0 0.0
    %1426 = vmatpush.msra.mxu0 0.0
    %1427 = vmatpush.msra.mxu0 0.0
    %1428 = vmatpush.msra.mxu0 0.0
    %1429 = vmatpush.msra.mxu0 0.0
    %1430 = vmatpush.msra.mxu0 0.0
    %1431 = vmatpush.msra.mxu0 0.0
    %1432 = vmatpush.msra.mxu0 0.0
    %1433 = vmatpush.msra.mxu0 0.0
    %1434 = vmatpush.msra.mxu0 %v1400
    %1435 = vmatpush.msra.mxu0 %v1374
    %1436 = vmatpush.msra.mxu0 %v1366
    %1437 = vmatpush.msra.mxu0 %v1358
    %1438 = vmatpush.msra.mxu0 %v1350
    %1439 = vmatmul.f32.gmra.mxu0 %v1397
    %v1440 = vpop.f32.mrf.mxu0
    %v1441 = vadd.f32 %v1394, %v1440
    %1442 = vdwg.mxu0
    %1443 = vmatpush.msra.mxu0 0.0
    %1444 = vmatpush.msra.mxu0 0.0
    %1445 = vmatpush.msra.mxu0 0.0
    %1446 = vmatpush.msra.mxu0 0.0
    %1447 = vmatpush.msra.mxu0 0.0
    %1448 = vmatpush.msra.mxu0 0.0
    %1449 = vmatpush.msra.mxu0 0.0
    %1450 = vmatpush.msra.mxu0 0.0
    %1451 = vmatpush.msra.mxu0 0.0
    %1452 = vmatpush.msra.mxu0 0.0
    %1453 = vmatpush.msra.mxu0 0.0
    %1454 = vmatpush.msra.mxu0 %v1403
    %1455 = vmatpush.msra.mxu0 %v1375
    %1456 = vmatpush.msra.mxu0 %v1367
    %1457 = vmatpush.msra.mxu0 %v1359
    %1458 = vmatpush.msra.mxu0 %v1351
    %1459 = vmatmul.f32.gmra.mxu0 %v1397
    %v1460 = vpop.f32.mrf.mxu0
    %v1461 = vadd.f32 %v1394, %v1460
    %1462 = vdwg.mxu0
    %1463 = vmatpush.msra.mxu0 0.0
    %1464 = vmatpush.msra.mxu0 0.0
    %1465 = vmatpush.msra.mxu0 0.0
    %1466 = vmatpush.msra.mxu0 0.0
    %1467 = vmatpush.msra.mxu0 0.0
    %1468 = vmatpush.msra.mxu0 0.0
    %1469 = vmatpush.msra.mxu0 0.0
    %1470 = vmatpush.msra.mxu0 0.0
    %1471 = vmatpush.msra.mxu0 0.0
    %1472 = vmatpush.msra.mxu0 0.0
    %1473 = vmatpush.msra.mxu0 0.0
    %1474 = vmatpush.msra.mxu0 %v1406
    %1475 = vmatpush.msra.mxu0 %v1376
    %1476 = vmatpush.msra.mxu0 %v1368
    %1477 = vmatpush.msra.mxu0 %v1360
    %1478 = vmatpush.msra.mxu0 %v1352
    %1479 = vmatmul.f32.gmra.mxu0 %v1397
    %v1480 = vpop.f32.mrf.mxu0
    %v1481 = vadd.f32 %v1394, %v1480
    %1482 = vdwg.mxu0
    %1483 = vmatpush.msra.mxu0 0.0
    %1484 = vmatpush.msra.mxu0 0.0
    %1485 = vmatpush.msra.mxu0 0.0
    %1486 = vmatpush.msra.mxu0 0.0
    %1487 = vmatpush.msra.mxu0 0.0
    %1488 = vmatpush.msra.mxu0 0.0
    %1489 = vmatpush.msra.mxu0 0.0
    %1490 = vmatpush.msra.mxu0 0.0
    %1491 = vmatpush.msra.mxu0 0.0
    %1492 = vmatpush.msra.mxu0 0.0
    %1493 = vmatpush.msra.mxu0 0.0
    %1494 = vmatpush.msra.mxu0 %v1409
    %1495 = vmatpush.msra.mxu0 %v1377
    %1496 = vmatpush.msra.mxu0 %v1369
    %1497 = vmatpush.msra.mxu0 %v1361
    %1498 = vmatpush.msra.mxu0 %v1353
    %1499 = vmatmul.f32.gmra.mxu0 %v1397
    %v1500 = vpop.f32.mrf.mxu0
    %v1501 = vadd.f32 %v1394, %v1500
    %1502 = vdwg.mxu0
    %1503 = vmatpush.msra.mxu0 0.0
    %1504 = vmatpush.msra.mxu0 0.0
    %1505 = vmatpush.msra.mxu0 0.0
    %1506 = vmatpush.msra.mxu0 0.0
    %1507 = vmatpush.msra.mxu0 0.0
    %1508 = vmatpush.msra.mxu0 0.0
    %1509 = vmatpush.msra.mxu0 0.0
    %1510 = vmatpush.msra.mxu0 0.0
    %1511 = vmatpush.msra.mxu0 0.0
    %1512 = vmatpush.msra.mxu0 0.0
    %1513 = vmatpush.msra.mxu0 0.0
    %1514 = vmatpush.msra.mxu0 %v1412
    %1515 = vmatpush.msra.mxu0 %v1378
    %1516 = vmatpush.msra.mxu0 %v1370
    %1517 = vmatpush.msra.mxu0 %v1362
    %1518 = vmatpush.msra.mxu0 %v1354
    %1519 = vmatmul.f32.gmra.mxu0 %v1397
    %v1520 = vpop.f32.mrf.mxu0
    %v1521 = vadd.f32 %v1394, %v1520
    %1522 = vdwg.mxu0
    %1523 = vmatpush.msra.mxu0 0.0
    %1524 = vmatpush.msra.mxu0 0.0
    %1525 = vmatpush.msra.mxu0 0.0
    %1526 = vmatpush.msra.mxu0 0.0
    %1527 = vmatpush.msra.mxu0 0.0
    %1528 = vmatpush.msra.mxu0 0.0
    %1529 = vmatpush.msra.mxu0 0.0
    %1530 = vmatpush.msra.mxu0 0.0
    %1531 = vmatpush.msra.mxu0 0.0
    %1532 = vmatpush.msra.mxu0 0.0
    %1533 = vmatpush.msra.mxu0 0.0
    %1534 = vmatpush.msra.mxu0 %v1415
    %1535 = vmatpush.msra.mxu0 %v1379
    %1536 = vmatpush.msra.mxu0 %v1371
    %1537 = vmatpush.msra.mxu0 %v1363
    %1538 = vmatpush.msra.mxu0 %v1355
    %1539 = vmatmul.f32.gmra.mxu0 %v1397
    %v1540 = vpop.f32.mrf.mxu0
    %v1541 = vadd.f32 %v1394, %v1540
    %1542 = vdwg.mxu0
    %1543 = vmatpush.msra.mxu0 0.0
    %1544 = vmatpush.msra.mxu0 0.0
    %1545 = vmatpush.msra.mxu0 0.0
    %1546 = vmatpush.msra.mxu0 0.0
    %1547 = vmatpush.msra.mxu0 0.0
    %1548 = vmatpush.msra.mxu0 0.0
    %1549 = vmatpush.msra.mxu0 0.0
    %1550 = vmatpush.msra.mxu0 0.0
    %1551 = vmatpush.msra.mxu0 0.0
    %1552 = vmatpush.msra.mxu0 0.0
    %1553 = vmatpush.msra.mxu0 0.0
    %1554 = vmatpush.msra.mxu0 %v1418
    %1555 = vmatpush.msra.mxu0 %v1380
    %1556 = vmatpush.msra.mxu0 %v1372
    %1557 = vmatpush.msra.mxu0 %v1364
    %1558 = vmatpush.msra.mxu0 %v1356
    %1559 = vmatmul.f32.gmra.mxu0 %v1397
    %v1560 = vpop.f32.mrf.mxu0
    %v1561 = vadd.f32 %v1394, %v1560
    %1562 = vdwg.mxu0
    %1563 = vmatpush.msra.mxu0 0.0
    %1564 = vmatpush.msra.mxu0 0.0
    %1565 = vmatpush.msra.mxu0 0.0
    %1566 = vmatpush.msra.mxu0 0.0
    %1567 = vmatpush.msra.mxu0 0.0
    %1568 = vmatpush.msra.mxu0 0.0
    %1569 = vmatpush.msra.mxu0 0.0
    %1570 = vmatpush.msra.mxu0 0.0
    %1571 = vmatpush.msra.mxu0 0.0
    %1572 = vmatpush.msra.mxu0 0.0
    %1573 = vmatpush.msra.mxu0 0.0
    %1574 = vmatpush.msra.mxu0 %v1421
    %1575 = vmatpush.msra.mxu0 %v1381
    %1576 = vmatpush.msra.mxu0 %v1373
    %1577 = vmatpush.msra.mxu0 %v1365
    %1578 = vmatpush.msra.mxu0 %v1357
    %1579 = vmatmul.f32.gmra.mxu0 %v1397
    %v1580 = vpop.f32.mrf.mxu0
    %v1581 = vadd.f32 %v1394, %v1580
    %1582 = vdwg.mxu0
    %v1583 = vld [vmem:[#allocation3] sm:$0xff]
    %v1584 = vld [vmem:[#allocation3 + $0x8] sm:$0xff]
    %v1589 = vrot.slane %v1461, 4
    %v1590 = vrot.slane %v1501, 4
    %v1591 = vsel %vm537, %v1441, %v1589
    %v1592 = vsel %vm537, %v1481, %v1590
    %v1595 = vadd.f32 %v1583, %v1591
    %v1596 = vadd.f32 %v1584, %v1592
    %1597 = vst [vmem:[#allocation6] sm:$0xff] %v1595
    %1598 = vst [vmem:[#allocation6 + $0x8] sm:$0xff] %v1596
    %v1599 = vld [vmem:[%s39] sm:$0xff]
    %v1600 = vld [vmem:[%s39 + $0x8] sm:$0xff]
    %v1605 = vrot.slane %v1541, 4
    %v1606 = vrot.slane %v1581, 4
    %v1607 = vsel %vm537, %v1521, %v1605
    %v1608 = vsel %vm537, %v1561, %v1606
    %v1611 = vadd.f32 %v1599, %v1607
    %v1612 = vadd.f32 %v1600, %v1608
    %s1613 = scalar_lea.vmem [#allocation6], 16
    %1614 = vst [vmem:[%s1613] sm:$0xff] %v1611
    %1615 = vst [vmem:[%s1613 + $0x8] sm:$0xff] %v1612
    // Predicated region
    $region26: #{tpu_custom_call.1} parent=1 // pred_check
      _
    $region27: #{tpu_custom_call.1} parent=1 // pred_check_branch
      %1617 = sbr.rel (0) target = $region29
    $region28: #{tpu_custom_call.1} parent=1 // pred_region
      %1619 = vsyncadd [#allocation5], 0
      %s1620 = sshll.u32 [#allocation6], 4
      %s1621 = int_to_ptr.vmem [resolvable:$true] %s1620
      %s1622 = sshll.u32 %s5, 4
      %s1623 = int_to_ptr.hbm [resolvable:$true] %s1622
      %1628 = dma.vmem_to_hbm [thread:$0]  %s1621, 512, %s1623, [#allocation5], 256, 256, 16
    $region29: #{tpu_custom_call.1} parent=1 // pred_fallthru
      _
    // Predicated region
    $region30: #{tpu_custom_call.1} parent=1 // pred_check
      _
    $region31: #{tpu_custom_call.1} parent=1 // pred_check_branch
      %1630 = sbr.rel (0) target = $region33
    $region32: #{tpu_custom_call.1} parent=1 // pred_region
      %1632 = dma.done [#allocation5], 512
    $region33: #{tpu_custom_call.1} parent=1 // pred_fallthru
      _
    %1633 = vsyncpa [#allocation4], 1
    %1634 = vsyncpa [#allocation5], 1

</llo_original>
